<compile_context>
chip_gen: v6e
topology: v6e:2x2x1
jax: 0.10.0
libtpu: 0.0.40
codegen_flags: <defaults>
</compile_context>

<pallas_src>
import jax
import jax.numpy as jnp
from jax.experimental import pallas as pl
from jax.experimental.pallas import tpu as pltpu

_EPS = 1e-12  # F.normalize(p=2, dim=1, eps=1e-12)


def _compute_row_inv(w_ref, inv_ref):
    """1 / max(||w_row||, eps) for the current W tile, cached in VMEM scratch.

    Only recomputed when the inner (M-tile) grid index is 0, i.e. once per
    W tile; reused for every M tile that shares this W tile.
    """

    @pl.when(pl.program_id(1) == 0)
    def _():
        w_f32 = w_ref[...].astype(jnp.float32)                    # (tn, K)
        sumsq = jnp.sum(w_f32 * w_f32, axis=-1)                   # (tn,)
        # 1/max(||w||, eps) == rsqrt(max(sumsq, eps^2))  (EUP rsqrt)
        inv_ref[...] = jax.lax.rsqrt(jnp.maximum(sumsq, _EPS * _EPS))[None, :]


def _arcface_linear_kernel(x_ref, w_ref, o_ref, inv_ref):
    _compute_row_inv(w_ref, inv_ref)
    acc = jax.lax.dot_general(                                    # (tm, tn) f32
        x_ref[...], w_ref[...],
        dimension_numbers=(((1,), (1,)), ((), ())),               # contract on K of both
        preferred_element_type=jnp.float32,
    )
    o_ref[...] = (acc * inv_ref[...]).astype(o_ref.dtype)


def _arcface_linear_bias_kernel(x_ref, w_ref, b_ref, o_ref, inv_ref):
    _compute_row_inv(w_ref, inv_ref)
    acc = jax.lax.dot_general(
        x_ref[...], w_ref[...],
        dimension_numbers=(((1,), (1,)), ((), ())),
        preferred_element_type=jnp.float32,
    )
    acc = acc * inv_ref[...] + b_ref[...].astype(jnp.float32)     # fused bias
    o_ref[...] = acc.astype(o_ref.dtype)


def _fit_block(cap, full, align):
    """Largest block <= cap that is either == full dim or a multiple of align."""
    if cap >= full:
        return full
    return max(align, (cap // align) * align)


def _choose_tiles(M, N, K, x_bytes, w_bytes, o_bytes, sub):
    tm_cap = 2048 if x_bytes <= 2 else 1024   # resident x for typical batches
    tn_cap = 1024                             # long contiguous W DMAs
    budget = 28 * 1024 * 1024                 # stays well under v7x's 64 MiB VMEM

    tm = _fit_block(tm_cap, M, sub)
    tn = _fit_block(tn_cap, N, 128)

    def usage(tm_, tn_):
        return (2 * tm_ * K * x_bytes          # x double-buffer
                + 2 * tn_ * K * w_bytes        # W double-buffer
                + 2 * tm_ * tn_ * o_bytes      # out double-buffer
                + 8 * tn_ * 4)                 # (1, tn) inv scratch (sublane-padded)

    # Shrink tm first (x is the cheap-to-restream operand), then tn.
    while usage(tm, tn) > budget and tm > 128:
        tm = _fit_block(tm // 2, M, sub)
    while usage(tm, tn) > budget and tn > 128:
        tn = _fit_block(tn // 2, N, 128)

    return tm, tn, usage(tm, tn)


def arcface_linear(x, weight, bias=None, *, tm=None, tn=None):
    """x: (batch, in_features); weight: (out_features, in_features);
    bias: optional (out_features,)."""
    M, K = x.shape
    N, K2 = weight.shape
    assert K == K2, (x.shape, weight.shape)
    out_dtype = x.dtype

    x_bytes = jnp.dtype(x.dtype).itemsize
    w_bytes = jnp.dtype(weight.dtype).itemsize
    o_bytes = jnp.dtype(out_dtype).itemsize
    sub = 16 if x_bytes <= 2 else 8           # bf16 packs 2 rows / sublane

    tm_auto, tn_auto, used = _choose_tiles(M, N, K, x_bytes, w_bytes, o_bytes, sub)
    if tm is None:
        tm = tm_auto
    if tn is None:
        tn = tn_auto
    used = (2 * tm * K * x_bytes + 2 * tn * K * w_bytes
            + 2 * tm * tn * o_bytes + 8 * tn * 4)
    vmem_limit = int(min(48 * 1024 * 1024, max(32 * 1024 * 1024, 1.5 * used)))

    # N tiles on the leading ("parallel") axis: W is read exactly once and the
    # many class tiles shard across TensorCores; the inner M axis is
    # "arbitrary" so the cached inv scratch is valid across M tiles.
    grid = (pl.cdiv(N, tn), pl.cdiv(M, tm))

    in_specs = [
        pl.BlockSpec((tm, K), lambda j, i: (i, 0)),    # x tile (K un-tiled)
        pl.BlockSpec((tn, K), lambda j, i: (j, 0)),    # W tile: full rows
    ]
    inputs = [x, weight]
    bytes_accessed = M * K * x_bytes + N * K * w_bytes + M * N * o_bytes
    if bias is not None:
        in_specs.append(pl.BlockSpec((1, tn), lambda j, i: (0, j)))
        inputs.append(bias.reshape(1, N))
        kernel = _arcface_linear_bias_kernel
        bytes_accessed += N * jnp.dtype(bias.dtype).itemsize
    else:
        kernel = _arcface_linear_kernel

    cost = pl.CostEstimate(
        flops=2 * M * N * K,
        transcendentals=N,                    # one rsqrt per W row
        bytes_accessed=bytes_accessed,
    )

    out = pl.pallas_call(
        kernel,
        out_shape=jax.ShapeDtypeStruct((M, N), out_dtype),
        grid_spec=pltpu.PrefetchScalarGridSpec(
            num_scalar_prefetch=0,
            grid=grid,
            in_specs=in_specs,
            out_specs=pl.BlockSpec((tm, tn), lambda j, i: (i, j)),
            scratch_shapes=[pltpu.VMEM((1, tn), jnp.float32)],   # cached 1/||w_row||
        ),
        compiler_params=pltpu.CompilerParams(
            dimension_semantics=("parallel", "arbitrary"),
            vmem_limit_bytes=vmem_limit,
        ),
        cost_estimate=cost,
    )(*inputs)
    return out


if __name__ == "__main__":
    key = jax.random.PRNGKey(0)
    kx, kw, kb = jax.random.split(key, 3)

    batch, in_features, out_features = 8, 64, 256
    x = jax.random.normal(kx, (batch, in_features), dtype=jnp.float32)
    w = jax.random.normal(kw, (out_features, in_features), dtype=jnp.float32)

    # Reference: F.linear(x, F.normalize(w, p=2, dim=1))
    w_norm = w / jnp.maximum(
        jnp.sqrt(jnp.sum(w * w, axis=1, keepdims=True)), _EPS)
    ref = x @ w_norm.T

    # bias=False (module default)
    out = jax.block_until_ready(arcface_linear(x, w))
    assert out.shape == (batch, out_features)
    max_err = float(jnp.max(jnp.abs(out - ref)))
    assert max_err < 1e-3, f"max abs error {max_err}"

    # bias=True path (fused in-kernel bias add)
    b = jax.random.normal(kb, (out_features,), dtype=jnp.float32)
    out_b = jax.block_until_ready(arcface_linear(x, w, b))
    max_err_b = float(jnp.max(jnp.abs(out_b - (ref + b))))
    assert max_err_b < 1e-3, f"max abs error (bias) {max_err_b}"

    print("KERNEL_OK")
</pallas_src>

<mosaic_0001>
module attributes {stable_mosaic.version = 11 : i64} {
  func.func @_arcface_linear_kernel(%arg0: i32, %arg1: i32, %arg2: memref<8x64xf32, #tpu.memory_space<vmem>>, %arg3: memref<256x64xf32, #tpu.memory_space<vmem>>, %arg4: memref<8x256xf32, #tpu.memory_space<vmem>>, %arg5: memref<1x256xf32, #tpu.memory_space<vmem>>) attributes {dimension_semantics = [#tpu.dimension_semantics<parallel>, #tpu.dimension_semantics<arbitrary>], iteration_bounds = array<i64: 1, 1>, scalar_prefetch = 0 : i64, scratch_operands = 1 : i64, tpu.core_type = #tpu.core_type<tc>, window_params = [{transform_indices = @transform_0, window_bounds = array<i64: 8, 64>}, {transform_indices = @transform_1, window_bounds = array<i64: 256, 64>}, {transform_indices = @transform_2, window_bounds = array<i64: 8, 256>}]} {
    %c0_i32 = arith.constant 0 : i32
    %0 = arith.cmpi eq, %arg1, %c0_i32 : i32
    %1 = arith.extui %0 : i1 to i32
    %c0_i32_0 = arith.constant 0 : i32
    %2 = arith.cmpi ne, %1, %c0_i32_0 : i32
    scf.if %2 {
      %c0_8 = arith.constant 0 : index
      %c0_9 = arith.constant 0 : index
      %10 = vector.load %arg3[%c0_8, %c0_9] : memref<256x64xf32, #tpu.memory_space<vmem>>, vector<256x64xf32>
      %11 = arith.mulf %10, %10 : vector<256x64xf32>
      %cst_10 = arith.constant dense<0.000000e+00> : vector<256xf32>
      %12 = vector.multi_reduction <add>, %11, %cst_10 [1] : vector<256x64xf32> to vector<256xf32>
      %cst_11 = arith.constant 1.000000e-24 : f32
      %13 = vector.broadcast %cst_11 : f32 to vector<256xf32>
      %14 = arith.maximumf %12, %13 : vector<256xf32>
      %15 = math.rsqrt %14 : vector<256xf32>
      %16 = vector.shape_cast %15 : vector<256xf32> to vector<1x256xf32>
      %c0_12 = arith.constant 0 : index
      %c0_13 = arith.constant 0 : index
      %17 = vector.load %arg5[%c0_12, %c0_13] : memref<1x256xf32, #tpu.memory_space<vmem>>, vector<1x256xf32>
      tpu.vector_store %arg5[%c0_12, %c0_13], %16 {strides = array<i32>} : memref<1x256xf32, #tpu.memory_space<vmem>>, vector<1x256xf32>,
    } else {
    }
    %c0 = arith.constant 0 : index
    %c0_1 = arith.constant 0 : index
    %3 = vector.load %arg2[%c0, %c0_1] : memref<8x64xf32, #tpu.memory_space<vmem>>, vector<8x64xf32>
    %c0_2 = arith.constant 0 : index
    %c0_3 = arith.constant 0 : index
    %4 = vector.load %arg3[%c0_2, %c0_3] : memref<256x64xf32, #tpu.memory_space<vmem>>, vector<256x64xf32>
    %cst = arith.constant dense<0.000000e+00> : vector<8x256xf32>
    %5 = tpu.matmul %3, %4, %cst {dimension_numbers = #tpu.dot_dimension_numbers<[1], [1], [0], [0], [0, 0, 1, 0], [], []>} : vector<8x64xf32>, vector<256x64xf32>, vector<8x256xf32> -> vector<8x256xf32>
    %c0_4 = arith.constant 0 : index
    %c0_5 = arith.constant 0 : index
    %6 = vector.load %arg5[%c0_4, %c0_5] : memref<1x256xf32, #tpu.memory_space<vmem>>, vector<1x256xf32>
    %7 = vector.broadcast %6 : vector<1x256xf32> to vector<8x256xf32>
    %8 = arith.mulf %5, %7 : vector<8x256xf32>
    %c0_6 = arith.constant 0 : index
    %c0_7 = arith.constant 0 : index
    %9 = vector.load %arg4[%c0_6, %c0_7] : memref<8x256xf32, #tpu.memory_space<vmem>>, vector<8x256xf32>
    tpu.vector_store %arg4[%c0_6, %c0_7], %8 {strides = array<i32>} : memref<8x256xf32, #tpu.memory_space<vmem>>, vector<8x256xf32>,
    return
  }
  func.func @transform_0(%arg0: i32, %arg1: i32) -> (i32, i32) {
    %c0_i32 = arith.constant 0 : i32
    %c0_i32_0 = arith.constant 0 : i32
    return %arg1, %c0_i32 : i32, i32
  }
  func.func @transform_1(%arg0: i32, %arg1: i32) -> (i32, i32) {
    %c0_i32 = arith.constant 0 : i32
    %c0_i32_0 = arith.constant 0 : i32
    return %arg0, %c0_i32 : i32, i32
  }
  func.func @transform_2(%arg0: i32, %arg1: i32) -> (i32, i32) {
    %c0_i32 = arith.constant 0 : i32
    return %arg1, %arg0 : i32, i32
  }
}

</mosaic_0001>

<llo_original>
// kernel: tpu_custom_call.1
$region0: #{tpu_custom_call.1}
  #allocation0 [shape = 'u32[]', space=smem, size = 0x4, offset = 0x4, fixed_abs, tag = 'smem constant byte address 0x4 - core index']
  #allocation1 [shape = 'u32[144,128]{1,0:T(1,128)}', space=vmem, size = 0x12000, scoped, tag = 'internal scratch']
  #allocation2 [shape = 'f32[1,256]{1,0:T(1,128)}', space=vmem, size = 0x400, scoped, tag = 'scratch operand']
  %s0 = inlined_call_operand.vmem [shape: f32[8,64], index: 0, kind: input, shape index: {}]
  %s1 = inlined_call_operand.vmem [shape: f32[256,64], index: 1, kind: input, shape index: {}]
  %s2 = inlined_call_operand.hbm [shape: f32[8,256], index: 2, kind: output, shape index: {}]
  %s3 = sld [smem:[#allocation0]]
  $region22: #{tpu_custom_call.1} parent=0
    _
  %s5 = ssub.s32 1, %s3
  %s6 = scalar_select 0, %s5, %s3
  $region1: #{tpu_custom_call.1} parent=0
    #allocation3 [shape = 'u8[8192]{0}', space=vmem, size = 0x2000, scoped, tag = 'output window, operand 0, single buffered']
    #allocation4 [shape = 's32[1]{0}', space=sflag, size = 0x4, scoped, tag = 'scoped memory for tpu_custom_call.1']
    %7 = vsyncpa [#allocation4], 0
    // Predicated region
    $region2: #{tpu_custom_call.1} parent=1 // pred_check
      _
    $region3: #{tpu_custom_call.1} parent=1 // pred_check_branch
      %9 = sbr.rel (0) target = $region5
    $region4: #{tpu_custom_call.1} parent=1 // pred_region
      _
    $region5: #{tpu_custom_call.1} parent=1 // pred_fallthru
      _
    // Predicated region
    $region6: #{tpu_custom_call.1} parent=1 // pred_check
      _
    $region7: #{tpu_custom_call.1} parent=1 // pred_check_branch
      %11 = sbr.rel (0) target = $region9
    $region8: #{tpu_custom_call.1} parent=1 // pred_region
      _
    $region9: #{tpu_custom_call.1} parent=1 // pred_fallthru
      _
    %p12 = scmp.eq.s32.totalorder 0, 0
    // Predicated region
    $region10: #{tpu_custom_call.1} parent=1 // pred_check
      %p13 = pneg %p12
    $region11: #{tpu_custom_call.1} parent=1 // pred_check_branch
      %15 = sbr.rel (%p13) target = $region13
    $region12: #{tpu_custom_call.1} parent=1 // pred_region
      %v16 = vld [vmem:[%s1] sm:$0xff]
      %v17 = vld [vmem:[%s1 + $0x8] sm:$0xff]
      %v18 = vld [vmem:[%s1 + $0x10] sm:$0xff]
      %v19 = vld [vmem:[%s1 + $0x18] sm:$0xff]
      %v20 = vld [vmem:[%s1 + $0x20] sm:$0xff]
      %v21 = vld [vmem:[%s1 + $0x28] sm:$0xff]
      %v22 = vld [vmem:[%s1 + $0x30] sm:$0xff]
      %v23 = vld [vmem:[%s1 + $0x38] sm:$0xff]
      %v24 = vld [vmem:[%s1 + $0x40] sm:$0xff]
      %v25 = vld [vmem:[%s1 + $0x48] sm:$0xff]
      %v26 = vld [vmem:[%s1 + $0x50] sm:$0xff]
      %v27 = vld [vmem:[%s1 + $0x58] sm:$0xff]
      %v28 = vld [vmem:[%s1 + $0x60] sm:$0xff]
      %v29 = vld [vmem:[%s1 + $0x68] sm:$0xff]
      %v30 = vld [vmem:[%s1 + $0x70] sm:$0xff]
      %v31 = vld [vmem:[%s1 + $0x78] sm:$0xff]
      %v32 = vld [vmem:[%s1 + $0x80] sm:$0xff]
      %v33 = vld [vmem:[%s1 + $0x88] sm:$0xff]
      %v34 = vld [vmem:[%s1 + $0x90] sm:$0xff]
      %v35 = vld [vmem:[%s1 + $0x98] sm:$0xff]
      %v36 = vld [vmem:[%s1 + $0xa0] sm:$0xff]
      %v37 = vld [vmem:[%s1 + $0xa8] sm:$0xff]
      %v38 = vld [vmem:[%s1 + $0xb0] sm:$0xff]
      %v39 = vld [vmem:[%s1 + $0xb8] sm:$0xff]
      %v40 = vld [vmem:[%s1 + $0xc0] sm:$0xff]
      %v41 = vld [vmem:[%s1 + $0xc8] sm:$0xff]
      %v42 = vld [vmem:[%s1 + $0xd0] sm:$0xff]
      %v43 = vld [vmem:[%s1 + $0xd8] sm:$0xff]
      %v44 = vld [vmem:[%s1 + $0xe0] sm:$0xff]
      %v45 = vld [vmem:[%s1 + $0xe8] sm:$0xff]
      %v46 = vld [vmem:[%s1 + $0xf0] sm:$0xff]
      %v47 = vld [vmem:[%s1 + $0xf8] sm:$0xff]
      %v48 = vmul.f32 %v16, %v16
      %v49 = vmul.f32 %v17, %v17
      %v50 = vmul.f32 %v18, %v18
      %v51 = vmul.f32 %v19, %v19
      %v52 = vmul.f32 %v20, %v20
      %v53 = vmul.f32 %v21, %v21
      %v54 = vmul.f32 %v22, %v22
      %v55 = vmul.f32 %v23, %v23
      %v56 = vmul.f32 %v24, %v24
      %v57 = vmul.f32 %v25, %v25
      %v58 = vmul.f32 %v26, %v26
      %v59 = vmul.f32 %v27, %v27
      %v60 = vmul.f32 %v28, %v28
      %v61 = vmul.f32 %v29, %v29
      %v62 = vmul.f32 %v30, %v30
      %v63 = vmul.f32 %v31, %v31
      %v64 = vmul.f32 %v32, %v32
      %v65 = vmul.f32 %v33, %v33
      %v66 = vmul.f32 %v34, %v34
      %v67 = vmul.f32 %v35, %v35
      %v68 = vmul.f32 %v36, %v36
      %v69 = vmul.f32 %v37, %v37
      %v70 = vmul.f32 %v38, %v38
      %v71 = vmul.f32 %v39, %v39
      %v72 = vmul.f32 %v40, %v40
      %v73 = vmul.f32 %v41, %v41
      %v74 = vmul.f32 %v42, %v42
      %v75 = vmul.f32 %v43, %v43
      %v76 = vmul.f32 %v44, %v44
      %v77 = vmul.f32 %v45, %v45
      %v78 = vmul.f32 %v46, %v46
      %v79 = vmul.f32 %v47, %v47
      %vm80 = vcmask 523264
      %v81 = vsel %vm80, %v48, 0.0
      %82 = vadd.xlane.f32.xlu0 %v81
      %v83 = vpop.xlane.xlu0 %82
      %v84 = vsel %vm80, %v49, 0.0
      %85 = vadd.xlane.f32.xlu0 %v84
      %v86 = vpop.xlane.xlu0 %85
      %v87 = vsel %vm80, %v50, 0.0
      %88 = vadd.xlane.f32.xlu0 %v87
      %v89 = vpop.xlane.xlu0 %88
      %v90 = vsel %vm80, %v51, 0.0
      %91 = vadd.xlane.f32.xlu0 %v90
      %v92 = vpop.xlane.xlu0 %91
      %v93 = vsel %vm80, %v52, 0.0
      %94 = vadd.xlane.f32.xlu0 %v93
      %v95 = vpop.xlane.xlu0 %94
      %v96 = vsel %vm80, %v53, 0.0
      %97 = vadd.xlane.f32.xlu0 %v96
      %v98 = vpop.xlane.xlu0 %97
      %v99 = vsel %vm80, %v54, 0.0
      %100 = vadd.xlane.f32.xlu0 %v99
      %v101 = vpop.xlane.xlu0 %100
      %v102 = vsel %vm80, %v55, 0.0
      %103 = vadd.xlane.f32.xlu0 %v102
      %v104 = vpop.xlane.xlu0 %103
      %v105 = vsel %vm80, %v56, 0.0
      %106 = vadd.xlane.f32.xlu0 %v105
      %v107 = vpop.xlane.xlu0 %106
      %v108 = vsel %vm80, %v57, 0.0
      %109 = vadd.xlane.f32.xlu0 %v108
      %v110 = vpop.xlane.xlu0 %109
      %v111 = vsel %vm80, %v58, 0.0
      %112 = vadd.xlane.f32.xlu0 %v111
      %v113 = vpop.xlane.xlu0 %112
      %v114 = vsel %vm80, %v59, 0.0
      %115 = vadd.xlane.f32.xlu0 %v114
      %v116 = vpop.xlane.xlu0 %115
      %v117 = vsel %vm80, %v60, 0.0
      %118 = vadd.xlane.f32.xlu0 %v117
      %v119 = vpop.xlane.xlu0 %118
      %v120 = vsel %vm80, %v61, 0.0
      %121 = vadd.xlane.f32.xlu0 %v120
      %v122 = vpop.xlane.xlu0 %121
      %v123 = vsel %vm80, %v62, 0.0
      %124 = vadd.xlane.f32.xlu0 %v123
      %v125 = vpop.xlane.xlu0 %124
      %v126 = vsel %vm80, %v63, 0.0
      %127 = vadd.xlane.f32.xlu0 %v126
      %v128 = vpop.xlane.xlu0 %127
      %v129 = vsel %vm80, %v64, 0.0
      %130 = vadd.xlane.f32.xlu0 %v129
      %v131 = vpop.xlane.xlu0 %130
      %v132 = vsel %vm80, %v65, 0.0
      %133 = vadd.xlane.f32.xlu0 %v132
      %v134 = vpop.xlane.xlu0 %133
      %v135 = vsel %vm80, %v66, 0.0
      %136 = vadd.xlane.f32.xlu0 %v135
      %v137 = vpop.xlane.xlu0 %136
      %v138 = vsel %vm80, %v67, 0.0
      %139 = vadd.xlane.f32.xlu0 %v138
      %v140 = vpop.xlane.xlu0 %139
      %v141 = vsel %vm80, %v68, 0.0
      %142 = vadd.xlane.f32.xlu0 %v141
      %v143 = vpop.xlane.xlu0 %142
      %v144 = vsel %vm80, %v69, 0.0
      %145 = vadd.xlane.f32.xlu0 %v144
      %v146 = vpop.xlane.xlu0 %145
      %v147 = vsel %vm80, %v70, 0.0
      %148 = vadd.xlane.f32.xlu0 %v147
      %v149 = vpop.xlane.xlu0 %148
      %v150 = vsel %vm80, %v71, 0.0
      %151 = vadd.xlane.f32.xlu0 %v150
      %v152 = vpop.xlane.xlu0 %151
      %v153 = vsel %vm80, %v72, 0.0
      %154 = vadd.xlane.f32.xlu0 %v153
      %v155 = vpop.xlane.xlu0 %154
      %v156 = vsel %vm80, %v73, 0.0
      %157 = vadd.xlane.f32.xlu0 %v156
      %v158 = vpop.xlane.xlu0 %157
      %v159 = vsel %vm80, %v74, 0.0
      %160 = vadd.xlane.f32.xlu0 %v159
      %v161 = vpop.xlane.xlu0 %160
      %v162 = vsel %vm80, %v75, 0.0
      %163 = vadd.xlane.f32.xlu0 %v162
      %v164 = vpop.xlane.xlu0 %163
      %v165 = vsel %vm80, %v76, 0.0
      %166 = vadd.xlane.f32.xlu0 %v165
      %v167 = vpop.xlane.xlu0 %166
      %v168 = vsel %vm80, %v77, 0.0
      %169 = vadd.xlane.f32.xlu0 %v168
      %v170 = vpop.xlane.xlu0 %169
      %v171 = vsel %vm80, %v78, 0.0
      %172 = vadd.xlane.f32.xlu0 %v171
      %v173 = vpop.xlane.xlu0 %172
      %v174 = vsel %vm80, %v79, 0.0
      %175 = vadd.xlane.f32.xlu0 %v174
      %v176 = vpop.xlane.xlu0 %175
      %v177 = vmax.f32 %v83, 1e-24
      %v178 = vmax.f32 %v86, 1e-24
      %v179 = vmax.f32 %v89, 1e-24
      %v180 = vmax.f32 %v92, 1e-24
      %v181 = vmax.f32 %v95, 1e-24
      %v182 = vmax.f32 %v98, 1e-24
      %v183 = vmax.f32 %v101, 1e-24
      %v184 = vmax.f32 %v104, 1e-24
      %v185 = vmax.f32 %v107, 1e-24
      %v186 = vmax.f32 %v110, 1e-24
      %v187 = vmax.f32 %v113, 1e-24
      %v188 = vmax.f32 %v116, 1e-24
      %v189 = vmax.f32 %v119, 1e-24
      %v190 = vmax.f32 %v122, 1e-24
      %v191 = vmax.f32 %v125, 1e-24
      %v192 = vmax.f32 %v128, 1e-24
      %v193 = vmax.f32 %v131, 1e-24
      %v194 = vmax.f32 %v134, 1e-24
      %v195 = vmax.f32 %v137, 1e-24
      %v196 = vmax.f32 %v140, 1e-24
      %v197 = vmax.f32 %v143, 1e-24
      %v198 = vmax.f32 %v146, 1e-24
      %v199 = vmax.f32 %v149, 1e-24
      %v200 = vmax.f32 %v152, 1e-24
      %v201 = vmax.f32 %v155, 1e-24
      %v202 = vmax.f32 %v158, 1e-24
      %v203 = vmax.f32 %v161, 1e-24
      %v204 = vmax.f32 %v164, 1e-24
      %v205 = vmax.f32 %v167, 1e-24
      %v206 = vmax.f32 %v170, 1e-24
      %v207 = vmax.f32 %v173, 1e-24
      %v208 = vmax.f32 %v176, 1e-24
      %v209 = vrsqrt.pop %v177
      %v210 = vrsqrt.pop %v178
      %v211 = vrsqrt.pop %v179
      %v212 = vrsqrt.pop %v180
      %v213 = vrsqrt.pop %v181
      %v214 = vrsqrt.pop %v182
      %v215 = vrsqrt.pop %v183
      %v216 = vrsqrt.pop %v184
      %v217 = vrsqrt.pop %v185
      %v218 = vrsqrt.pop %v186
      %v219 = vrsqrt.pop %v187
      %v220 = vrsqrt.pop %v188
      %v221 = vrsqrt.pop %v189
      %v222 = vrsqrt.pop %v190
      %v223 = vrsqrt.pop %v191
      %v224 = vrsqrt.pop %v192
      %v225 = vrsqrt.pop %v193
      %v226 = vrsqrt.pop %v194
      %v227 = vrsqrt.pop %v195
      %v228 = vrsqrt.pop %v196
      %v229 = vrsqrt.pop %v197
      %v230 = vrsqrt.pop %v198
      %v231 = vrsqrt.pop %v199
      %v232 = vrsqrt.pop %v200
      %v233 = vrsqrt.pop %v201
      %v234 = vrsqrt.pop %v202
      %v235 = vrsqrt.pop %v203
      %v236 = vrsqrt.pop %v204
      %v237 = vrsqrt.pop %v205
      %v238 = vrsqrt.pop %v206
      %v239 = vrsqrt.pop %v207
      %v240 = vrsqrt.pop %v208
      %v273 = vlaneseq
      %v274 = vshrl.u32 %v273, 7
      %v275 = vsub.s32 0, %v274
      %v276 = vrot.slane %v209, %v275
      %v277 = vlaneseq
      %v278 = vshrl.u32 %v277, 7
      %v279 = vsub.s32 1, %v278
      %v280 = vrot.slane %v209, %v279
      %v281 = vlaneseq
      %v282 = vshrl.u32 %v281, 7
      %v283 = vsub.s32 2, %v282
      %v284 = vrot.slane %v209, %v283
      %v285 = vlaneseq
      %v286 = vshrl.u32 %v285, 7
      %v287 = vsub.s32 3, %v286
      %v288 = vrot.slane %v209, %v287
      %v289 = vlaneseq
      %v290 = vshrl.u32 %v289, 7
      %v291 = vsub.s32 4, %v290
      %v292 = vrot.slane %v209, %v291
      %v293 = vlaneseq
      %v294 = vshrl.u32 %v293, 7
      %v295 = vsub.s32 5, %v294
      %v296 = vrot.slane %v209, %v295
      %v297 = vlaneseq
      %v298 = vshrl.u32 %v297, 7
      %v299 = vsub.s32 6, %v298
      %v300 = vrot.slane %v209, %v299
      %v301 = vlaneseq
      %v302 = vshrl.u32 %v301, 7
      %v303 = vsub.s32 7, %v302
      %v304 = vrot.slane %v209, %v303
      %v305 = vlaneseq
      %v306 = vshrl.u32 %v305, 7
      %v307 = vsub.s32 0, %v306
      %v308 = vrot.slane %v210, %v307
      %v309 = vlaneseq
      %v310 = vshrl.u32 %v309, 7
      %v311 = vsub.s32 1, %v310
      %v312 = vrot.slane %v210, %v311
      %v313 = vlaneseq
      %v314 = vshrl.u32 %v313, 7
      %v315 = vsub.s32 2, %v314
      %v316 = vrot.slane %v210, %v315
      %v317 = vlaneseq
      %v318 = vshrl.u32 %v317, 7
      %v319 = vsub.s32 3, %v318
      %v320 = vrot.slane %v210, %v319
      %v321 = vlaneseq
      %v322 = vshrl.u32 %v321, 7
      %v323 = vsub.s32 4, %v322
      %v324 = vrot.slane %v210, %v323
      %v325 = vlaneseq
      %v326 = vshrl.u32 %v325, 7
      %v327 = vsub.s32 5, %v326
      %v328 = vrot.slane %v210, %v327
      %v329 = vlaneseq
      %v330 = vshrl.u32 %v329, 7
      %v331 = vsub.s32 6, %v330
      %v332 = vrot.slane %v210, %v331
      %v333 = vlaneseq
      %v334 = vshrl.u32 %v333, 7
      %v335 = vsub.s32 7, %v334
      %v336 = vrot.slane %v210, %v335
      %v337 = vlaneseq
      %v338 = vshrl.u32 %v337, 7
      %v339 = vsub.s32 0, %v338
      %v340 = vrot.slane %v211, %v339
      %v341 = vlaneseq
      %v342 = vshrl.u32 %v341, 7
      %v343 = vsub.s32 1, %v342
      %v344 = vrot.slane %v211, %v343
      %v345 = vlaneseq
      %v346 = vshrl.u32 %v345, 7
      %v347 = vsub.s32 2, %v346
      %v348 = vrot.slane %v211, %v347
      %v349 = vlaneseq
      %v350 = vshrl.u32 %v349, 7
      %v351 = vsub.s32 3, %v350
      %v352 = vrot.slane %v211, %v351
      %v353 = vlaneseq
      %v354 = vshrl.u32 %v353, 7
      %v355 = vsub.s32 4, %v354
      %v356 = vrot.slane %v211, %v355
      %v357 = vlaneseq
      %v358 = vshrl.u32 %v357, 7
      %v359 = vsub.s32 5, %v358
      %v360 = vrot.slane %v211, %v359
      %v361 = vlaneseq
      %v362 = vshrl.u32 %v361, 7
      %v363 = vsub.s32 6, %v362
      %v364 = vrot.slane %v211, %v363
      %v365 = vlaneseq
      %v366 = vshrl.u32 %v365, 7
      %v367 = vsub.s32 7, %v366
      %v368 = vrot.slane %v211, %v367
      %v369 = vlaneseq
      %v370 = vshrl.u32 %v369, 7
      %v371 = vsub.s32 0, %v370
      %v372 = vrot.slane %v212, %v371
      %v373 = vlaneseq
      %v374 = vshrl.u32 %v373, 7
      %v375 = vsub.s32 1, %v374
      %v376 = vrot.slane %v212, %v375
      %v377 = vlaneseq
      %v378 = vshrl.u32 %v377, 7
      %v379 = vsub.s32 2, %v378
      %v380 = vrot.slane %v212, %v379
      %v381 = vlaneseq
      %v382 = vshrl.u32 %v381, 7
      %v383 = vsub.s32 3, %v382
      %v384 = vrot.slane %v212, %v383
      %v385 = vlaneseq
      %v386 = vshrl.u32 %v385, 7
      %v387 = vsub.s32 4, %v386
      %v388 = vrot.slane %v212, %v387
      %v389 = vlaneseq
      %v390 = vshrl.u32 %v389, 7
      %v391 = vsub.s32 5, %v390
      %v392 = vrot.slane %v212, %v391
      %v393 = vlaneseq
      %v394 = vshrl.u32 %v393, 7
      %v395 = vsub.s32 6, %v394
      %v396 = vrot.slane %v212, %v395
      %v397 = vlaneseq
      %v398 = vshrl.u32 %v397, 7
      %v399 = vsub.s32 7, %v398
      %v400 = vrot.slane %v212, %v399
      %v401 = vlaneseq
      %v402 = vshrl.u32 %v401, 7
      %v403 = vsub.s32 0, %v402
      %v404 = vrot.slane %v213, %v403
      %v405 = vlaneseq
      %v406 = vshrl.u32 %v405, 7
      %v407 = vsub.s32 1, %v406
      %v408 = vrot.slane %v213, %v407
      %v409 = vlaneseq
      %v410 = vshrl.u32 %v409, 7
      %v411 = vsub.s32 2, %v410
      %v412 = vrot.slane %v213, %v411
      %v413 = vlaneseq
      %v414 = vshrl.u32 %v413, 7
      %v415 = vsub.s32 3, %v414
      %v416 = vrot.slane %v213, %v415
      %v417 = vlaneseq
      %v418 = vshrl.u32 %v417, 7
      %v419 = vsub.s32 4, %v418
      %v420 = vrot.slane %v213, %v419
      %v421 = vlaneseq
      %v422 = vshrl.u32 %v421, 7
      %v423 = vsub.s32 5, %v422
      %v424 = vrot.slane %v213, %v423
      %v425 = vlaneseq
      %v426 = vshrl.u32 %v425, 7
      %v427 = vsub.s32 6, %v426
      %v428 = vrot.slane %v213, %v427
      %v429 = vlaneseq
      %v430 = vshrl.u32 %v429, 7
      %v431 = vsub.s32 7, %v430
      %v432 = vrot.slane %v213, %v431
      %v433 = vlaneseq
      %v434 = vshrl.u32 %v433, 7
      %v435 = vsub.s32 0, %v434
      %v436 = vrot.slane %v214, %v435
      %v437 = vlaneseq
      %v438 = vshrl.u32 %v437, 7
      %v439 = vsub.s32 1, %v438
      %v440 = vrot.slane %v214, %v439
      %v441 = vlaneseq
      %v442 = vshrl.u32 %v441, 7
      %v443 = vsub.s32 2, %v442
      %v444 = vrot.slane %v214, %v443
      %v445 = vlaneseq
      %v446 = vshrl.u32 %v445, 7
      %v447 = vsub.s32 3, %v446
      %v448 = vrot.slane %v214, %v447
      %v449 = vlaneseq
      %v450 = vshrl.u32 %v449, 7
      %v451 = vsub.s32 4, %v450
      %v452 = vrot.slane %v214, %v451
      %v453 = vlaneseq
      %v454 = vshrl.u32 %v453, 7
      %v455 = vsub.s32 5, %v454
      %v456 = vrot.slane %v214, %v455
      %v457 = vlaneseq
      %v458 = vshrl.u32 %v457, 7
      %v459 = vsub.s32 6, %v458
      %v460 = vrot.slane %v214, %v459
      %v461 = vlaneseq
      %v462 = vshrl.u32 %v461, 7
      %v463 = vsub.s32 7, %v462
      %v464 = vrot.slane %v214, %v463
      %v465 = vlaneseq
      %v466 = vshrl.u32 %v465, 7
      %v467 = vsub.s32 0, %v466
      %v468 = vrot.slane %v215, %v467
      %v469 = vlaneseq
      %v470 = vshrl.u32 %v469, 7
      %v471 = vsub.s32 1, %v470
      %v472 = vrot.slane %v215, %v471
      %v473 = vlaneseq
      %v474 = vshrl.u32 %v473, 7
      %v475 = vsub.s32 2, %v474
      %v476 = vrot.slane %v215, %v475
      %v477 = vlaneseq
      %v478 = vshrl.u32 %v477, 7
      %v479 = vsub.s32 3, %v478
      %v480 = vrot.slane %v215, %v479
      %v481 = vlaneseq
      %v482 = vshrl.u32 %v481, 7
      %v483 = vsub.s32 4, %v482
      %v484 = vrot.slane %v215, %v483
      %v485 = vlaneseq
      %v486 = vshrl.u32 %v485, 7
      %v487 = vsub.s32 5, %v486
      %v488 = vrot.slane %v215, %v487
      %v489 = vlaneseq
      %v490 = vshrl.u32 %v489, 7
      %v491 = vsub.s32 6, %v490
      %v492 = vrot.slane %v215, %v491
      %v493 = vlaneseq
      %v494 = vshrl.u32 %v493, 7
      %v495 = vsub.s32 7, %v494
      %v496 = vrot.slane %v215, %v495
      %v497 = vlaneseq
      %v498 = vshrl.u32 %v497, 7
      %v499 = vsub.s32 0, %v498
      %v500 = vrot.slane %v216, %v499
      %v501 = vlaneseq
      %v502 = vshrl.u32 %v501, 7
      %v503 = vsub.s32 1, %v502
      %v504 = vrot.slane %v216, %v503
      %v505 = vlaneseq
      %v506 = vshrl.u32 %v505, 7
      %v507 = vsub.s32 2, %v506
      %v508 = vrot.slane %v216, %v507
      %v509 = vlaneseq
      %v510 = vshrl.u32 %v509, 7
      %v511 = vsub.s32 3, %v510
      %v512 = vrot.slane %v216, %v511
      %v513 = vlaneseq
      %v514 = vshrl.u32 %v513, 7
      %v515 = vsub.s32 4, %v514
      %v516 = vrot.slane %v216, %v515
      %v517 = vlaneseq
      %v518 = vshrl.u32 %v517, 7
      %v519 = vsub.s32 5, %v518
      %v520 = vrot.slane %v216, %v519
      %v521 = vlaneseq
      %v522 = vshrl.u32 %v521, 7
      %v523 = vsub.s32 6, %v522
      %v524 = vrot.slane %v216, %v523
      %v525 = vlaneseq
      %v526 = vshrl.u32 %v525, 7
      %v527 = vsub.s32 7, %v526
      %v528 = vrot.slane %v216, %v527
      %v529 = vlaneseq
      %v530 = vshrl.u32 %v529, 7
      %v531 = vsub.s32 0, %v530
      %v532 = vrot.slane %v217, %v531
      %v533 = vlaneseq
      %v534 = vshrl.u32 %v533, 7
      %v535 = vsub.s32 1, %v534
      %v536 = vrot.slane %v217, %v535
      %v537 = vlaneseq
      %v538 = vshrl.u32 %v537, 7
      %v539 = vsub.s32 2, %v538
      %v540 = vrot.slane %v217, %v539
      %v541 = vlaneseq
      %v542 = vshrl.u32 %v541, 7
      %v543 = vsub.s32 3, %v542
      %v544 = vrot.slane %v217, %v543
      %v545 = vlaneseq
      %v546 = vshrl.u32 %v545, 7
      %v547 = vsub.s32 4, %v546
      %v548 = vrot.slane %v217, %v547
      %v549 = vlaneseq
      %v550 = vshrl.u32 %v549, 7
      %v551 = vsub.s32 5, %v550
      %v552 = vrot.slane %v217, %v551
      %v553 = vlaneseq
      %v554 = vshrl.u32 %v553, 7
      %v555 = vsub.s32 6, %v554
      %v556 = vrot.slane %v217, %v555
      %v557 = vlaneseq
      %v558 = vshrl.u32 %v557, 7
      %v559 = vsub.s32 7, %v558
      %v560 = vrot.slane %v217, %v559
      %v561 = vlaneseq
      %v562 = vshrl.u32 %v561, 7
      %v563 = vsub.s32 0, %v562
      %v564 = vrot.slane %v218, %v563
      %v565 = vlaneseq
      %v566 = vshrl.u32 %v565, 7
      %v567 = vsub.s32 1, %v566
      %v568 = vrot.slane %v218, %v567
      %v569 = vlaneseq
      %v570 = vshrl.u32 %v569, 7
      %v571 = vsub.s32 2, %v570
      %v572 = vrot.slane %v218, %v571
      %v573 = vlaneseq
      %v574 = vshrl.u32 %v573, 7
      %v575 = vsub.s32 3, %v574
      %v576 = vrot.slane %v218, %v575
      %v577 = vlaneseq
      %v578 = vshrl.u32 %v577, 7
      %v579 = vsub.s32 4, %v578
      %v580 = vrot.slane %v218, %v579
      %v581 = vlaneseq
      %v582 = vshrl.u32 %v581, 7
      %v583 = vsub.s32 5, %v582
      %v584 = vrot.slane %v218, %v583
      %v585 = vlaneseq
      %v586 = vshrl.u32 %v585, 7
      %v587 = vsub.s32 6, %v586
      %v588 = vrot.slane %v218, %v587
      %v589 = vlaneseq
      %v590 = vshrl.u32 %v589, 7
      %v591 = vsub.s32 7, %v590
      %v592 = vrot.slane %v218, %v591
      %v593 = vlaneseq
      %v594 = vshrl.u32 %v593, 7
      %v595 = vsub.s32 0, %v594
      %v596 = vrot.slane %v219, %v595
      %v597 = vlaneseq
      %v598 = vshrl.u32 %v597, 7
      %v599 = vsub.s32 1, %v598
      %v600 = vrot.slane %v219, %v599
      %v601 = vlaneseq
      %v602 = vshrl.u32 %v601, 7
      %v603 = vsub.s32 2, %v602
      %v604 = vrot.slane %v219, %v603
      %v605 = vlaneseq
      %v606 = vshrl.u32 %v605, 7
      %v607 = vsub.s32 3, %v606
      %v608 = vrot.slane %v219, %v607
      %v609 = vlaneseq
      %v610 = vshrl.u32 %v609, 7
      %v611 = vsub.s32 4, %v610
      %v612 = vrot.slane %v219, %v611
      %v613 = vlaneseq
      %v614 = vshrl.u32 %v613, 7
      %v615 = vsub.s32 5, %v614
      %v616 = vrot.slane %v219, %v615
      %v617 = vlaneseq
      %v618 = vshrl.u32 %v617, 7
      %v619 = vsub.s32 6, %v618
      %v620 = vrot.slane %v219, %v619
      %v621 = vlaneseq
      %v622 = vshrl.u32 %v621, 7
      %v623 = vsub.s32 7, %v622
      %v624 = vrot.slane %v219, %v623
      %v625 = vlaneseq
      %v626 = vshrl.u32 %v625, 7
      %v627 = vsub.s32 0, %v626
      %v628 = vrot.slane %v220, %v627
      %v629 = vlaneseq
      %v630 = vshrl.u32 %v629, 7
      %v631 = vsub.s32 1, %v630
      %v632 = vrot.slane %v220, %v631
      %v633 = vlaneseq
      %v634 = vshrl.u32 %v633, 7
      %v635 = vsub.s32 2, %v634
      %v636 = vrot.slane %v220, %v635
      %v637 = vlaneseq
      %v638 = vshrl.u32 %v637, 7
      %v639 = vsub.s32 3, %v638
      %v640 = vrot.slane %v220, %v639
      %v641 = vlaneseq
      %v642 = vshrl.u32 %v641, 7
      %v643 = vsub.s32 4, %v642
      %v644 = vrot.slane %v220, %v643
      %v645 = vlaneseq
      %v646 = vshrl.u32 %v645, 7
      %v647 = vsub.s32 5, %v646
      %v648 = vrot.slane %v220, %v647
      %v649 = vlaneseq
      %v650 = vshrl.u32 %v649, 7
      %v651 = vsub.s32 6, %v650
      %v652 = vrot.slane %v220, %v651
      %v653 = vlaneseq
      %v654 = vshrl.u32 %v653, 7
      %v655 = vsub.s32 7, %v654
      %v656 = vrot.slane %v220, %v655
      %v657 = vlaneseq
      %v658 = vshrl.u32 %v657, 7
      %v659 = vsub.s32 0, %v658
      %v660 = vrot.slane %v221, %v659
      %v661 = vlaneseq
      %v662 = vshrl.u32 %v661, 7
      %v663 = vsub.s32 1, %v662
      %v664 = vrot.slane %v221, %v663
      %v665 = vlaneseq
      %v666 = vshrl.u32 %v665, 7
      %v667 = vsub.s32 2, %v666
      %v668 = vrot.slane %v221, %v667
      %v669 = vlaneseq
      %v670 = vshrl.u32 %v669, 7
      %v671 = vsub.s32 3, %v670
      %v672 = vrot.slane %v221, %v671
      %v673 = vlaneseq
      %v674 = vshrl.u32 %v673, 7
      %v675 = vsub.s32 4, %v674
      %v676 = vrot.slane %v221, %v675
      %v677 = vlaneseq
      %v678 = vshrl.u32 %v677, 7
      %v679 = vsub.s32 5, %v678
      %v680 = vrot.slane %v221, %v679
      %v681 = vlaneseq
      %v682 = vshrl.u32 %v681, 7
      %v683 = vsub.s32 6, %v682
      %v684 = vrot.slane %v221, %v683
      %v685 = vlaneseq
      %v686 = vshrl.u32 %v685, 7
      %v687 = vsub.s32 7, %v686
      %v688 = vrot.slane %v221, %v687
      %v689 = vlaneseq
      %v690 = vshrl.u32 %v689, 7
      %v691 = vsub.s32 0, %v690
      %v692 = vrot.slane %v222, %v691
      %v693 = vlaneseq
      %v694 = vshrl.u32 %v693, 7
      %v695 = vsub.s32 1, %v694
      %v696 = vrot.slane %v222, %v695
      %v697 = vlaneseq
      %v698 = vshrl.u32 %v697, 7
      %v699 = vsub.s32 2, %v698
      %v700 = vrot.slane %v222, %v699
      %v701 = vlaneseq
      %v702 = vshrl.u32 %v701, 7
      %v703 = vsub.s32 3, %v702
      %v704 = vrot.slane %v222, %v703
      %v705 = vlaneseq
      %v706 = vshrl.u32 %v705, 7
      %v707 = vsub.s32 4, %v706
      %v708 = vrot.slane %v222, %v707
      %v709 = vlaneseq
      %v710 = vshrl.u32 %v709, 7
      %v711 = vsub.s32 5, %v710
      %v712 = vrot.slane %v222, %v711
      %v713 = vlaneseq
      %v714 = vshrl.u32 %v713, 7
      %v715 = vsub.s32 6, %v714
      %v716 = vrot.slane %v222, %v715
      %v717 = vlaneseq
      %v718 = vshrl.u32 %v717, 7
      %v719 = vsub.s32 7, %v718
      %v720 = vrot.slane %v222, %v719
      %v721 = vlaneseq
      %v722 = vshrl.u32 %v721, 7
      %v723 = vsub.s32 0, %v722
      %v724 = vrot.slane %v223, %v723
      %v725 = vlaneseq
      %v726 = vshrl.u32 %v725, 7
      %v727 = vsub.s32 1, %v726
      %v728 = vrot.slane %v223, %v727
      %v729 = vlaneseq
      %v730 = vshrl.u32 %v729, 7
      %v731 = vsub.s32 2, %v730
      %v732 = vrot.slane %v223, %v731
      %v733 = vlaneseq
      %v734 = vshrl.u32 %v733, 7
      %v735 = vsub.s32 3, %v734
      %v736 = vrot.slane %v223, %v735
      %v737 = vlaneseq
      %v738 = vshrl.u32 %v737, 7
      %v739 = vsub.s32 4, %v738
      %v740 = vrot.slane %v223, %v739
      %v741 = vlaneseq
      %v742 = vshrl.u32 %v741, 7
      %v743 = vsub.s32 5, %v742
      %v744 = vrot.slane %v223, %v743
      %v745 = vlaneseq
      %v746 = vshrl.u32 %v745, 7
      %v747 = vsub.s32 6, %v746
      %v748 = vrot.slane %v223, %v747
      %v749 = vlaneseq
      %v750 = vshrl.u32 %v749, 7
      %v751 = vsub.s32 7, %v750
      %v752 = vrot.slane %v223, %v751
      %v753 = vlaneseq
      %v754 = vshrl.u32 %v753, 7
      %v755 = vsub.s32 0, %v754
      %v756 = vrot.slane %v224, %v755
      %v757 = vlaneseq
      %v758 = vshrl.u32 %v757, 7
      %v759 = vsub.s32 1, %v758
      %v760 = vrot.slane %v224, %v759
      %v761 = vlaneseq
      %v762 = vshrl.u32 %v761, 7
      %v763 = vsub.s32 2, %v762
      %v764 = vrot.slane %v224, %v763
      %v765 = vlaneseq
      %v766 = vshrl.u32 %v765, 7
      %v767 = vsub.s32 3, %v766
      %v768 = vrot.slane %v224, %v767
      %v769 = vlaneseq
      %v770 = vshrl.u32 %v769, 7
      %v771 = vsub.s32 4, %v770
      %v772 = vrot.slane %v224, %v771
      %v773 = vlaneseq
      %v774 = vshrl.u32 %v773, 7
      %v775 = vsub.s32 5, %v774
      %v776 = vrot.slane %v224, %v775
      %v777 = vlaneseq
      %v778 = vshrl.u32 %v777, 7
      %v779 = vsub.s32 6, %v778
      %v780 = vrot.slane %v224, %v779
      %v781 = vlaneseq
      %v782 = vshrl.u32 %v781, 7
      %v783 = vsub.s32 7, %v782
      %v784 = vrot.slane %v224, %v783
      %v785 = vlaneseq
      %v786 = vshrl.u32 %v785, 7
      %v787 = vsub.s32 0, %v786
      %v788 = vrot.slane %v225, %v787
      %v789 = vlaneseq
      %v790 = vshrl.u32 %v789, 7
      %v791 = vsub.s32 1, %v790
      %v792 = vrot.slane %v225, %v791
      %v793 = vlaneseq
      %v794 = vshrl.u32 %v793, 7
      %v795 = vsub.s32 2, %v794
      %v796 = vrot.slane %v225, %v795
      %v797 = vlaneseq
      %v798 = vshrl.u32 %v797, 7
      %v799 = vsub.s32 3, %v798
      %v800 = vrot.slane %v225, %v799
      %v801 = vlaneseq
      %v802 = vshrl.u32 %v801, 7
      %v803 = vsub.s32 4, %v802
      %v804 = vrot.slane %v225, %v803
      %v805 = vlaneseq
      %v806 = vshrl.u32 %v805, 7
      %v807 = vsub.s32 5, %v806
      %v808 = vrot.slane %v225, %v807
      %v809 = vlaneseq
      %v810 = vshrl.u32 %v809, 7
      %v811 = vsub.s32 6, %v810
      %v812 = vrot.slane %v225, %v811
      %v813 = vlaneseq
      %v814 = vshrl.u32 %v813, 7
      %v815 = vsub.s32 7, %v814
      %v816 = vrot.slane %v225, %v815
      %v817 = vlaneseq
      %v818 = vshrl.u32 %v817, 7
      %v819 = vsub.s32 0, %v818
      %v820 = vrot.slane %v226, %v819
      %v821 = vlaneseq
      %v822 = vshrl.u32 %v821, 7
      %v823 = vsub.s32 1, %v822
      %v824 = vrot.slane %v226, %v823
      %v825 = vlaneseq
      %v826 = vshrl.u32 %v825, 7
      %v827 = vsub.s32 2, %v826
      %v828 = vrot.slane %v226, %v827
      %v829 = vlaneseq
      %v830 = vshrl.u32 %v829, 7
      %v831 = vsub.s32 3, %v830
      %v832 = vrot.slane %v226, %v831
      %v833 = vlaneseq
      %v834 = vshrl.u32 %v833, 7
      %v835 = vsub.s32 4, %v834
      %v836 = vrot.slane %v226, %v835
      %v837 = vlaneseq
      %v838 = vshrl.u32 %v837, 7
      %v839 = vsub.s32 5, %v838
      %v840 = vrot.slane %v226, %v839
      %v841 = vlaneseq
      %v842 = vshrl.u32 %v841, 7
      %v843 = vsub.s32 6, %v842
      %v844 = vrot.slane %v226, %v843
      %v845 = vlaneseq
      %v846 = vshrl.u32 %v845, 7
      %v847 = vsub.s32 7, %v846
      %v848 = vrot.slane %v226, %v847
      %v849 = vlaneseq
      %v850 = vshrl.u32 %v849, 7
      %v851 = vsub.s32 0, %v850
      %v852 = vrot.slane %v227, %v851
      %v853 = vlaneseq
      %v854 = vshrl.u32 %v853, 7
      %v855 = vsub.s32 1, %v854
      %v856 = vrot.slane %v227, %v855
      %v857 = vlaneseq
      %v858 = vshrl.u32 %v857, 7
      %v859 = vsub.s32 2, %v858
      %v860 = vrot.slane %v227, %v859
      %v861 = vlaneseq
      %v862 = vshrl.u32 %v861, 7
      %v863 = vsub.s32 3, %v862
      %v864 = vrot.slane %v227, %v863
      %v865 = vlaneseq
      %v866 = vshrl.u32 %v865, 7
      %v867 = vsub.s32 4, %v866
      %v868 = vrot.slane %v227, %v867
      %v869 = vlaneseq
      %v870 = vshrl.u32 %v869, 7
      %v871 = vsub.s32 5, %v870
      %v872 = vrot.slane %v227, %v871
      %v873 = vlaneseq
      %v874 = vshrl.u32 %v873, 7
      %v875 = vsub.s32 6, %v874
      %v876 = vrot.slane %v227, %v875
      %v877 = vlaneseq
      %v878 = vshrl.u32 %v877, 7
      %v879 = vsub.s32 7, %v878
      %v880 = vrot.slane %v227, %v879
      %v881 = vlaneseq
      %v882 = vshrl.u32 %v881, 7
      %v883 = vsub.s32 0, %v882
      %v884 = vrot.slane %v228, %v883
      %v885 = vlaneseq
      %v886 = vshrl.u32 %v885, 7
      %v887 = vsub.s32 1, %v886
      %v888 = vrot.slane %v228, %v887
      %v889 = vlaneseq
      %v890 = vshrl.u32 %v889, 7
      %v891 = vsub.s32 2, %v890
      %v892 = vrot.slane %v228, %v891
      %v893 = vlaneseq
      %v894 = vshrl.u32 %v893, 7
      %v895 = vsub.s32 3, %v894
      %v896 = vrot.slane %v228, %v895
      %v897 = vlaneseq
      %v898 = vshrl.u32 %v897, 7
      %v899 = vsub.s32 4, %v898
      %v900 = vrot.slane %v228, %v899
      %v901 = vlaneseq
      %v902 = vshrl.u32 %v901, 7
      %v903 = vsub.s32 5, %v902
      %v904 = vrot.slane %v228, %v903
      %v905 = vlaneseq
      %v906 = vshrl.u32 %v905, 7
      %v907 = vsub.s32 6, %v906
      %v908 = vrot.slane %v228, %v907
      %v909 = vlaneseq
      %v910 = vshrl.u32 %v909, 7
      %v911 = vsub.s32 7, %v910
      %v912 = vrot.slane %v228, %v911
      %v913 = vlaneseq
      %v914 = vshrl.u32 %v913, 7
      %v915 = vsub.s32 0, %v914
      %v916 = vrot.slane %v229, %v915
      %v917 = vlaneseq
      %v918 = vshrl.u32 %v917, 7
      %v919 = vsub.s32 1, %v918
      %v920 = vrot.slane %v229, %v919
      %v921 = vlaneseq
      %v922 = vshrl.u32 %v921, 7
      %v923 = vsub.s32 2, %v922
      %v924 = vrot.slane %v229, %v923
      %v925 = vlaneseq
      %v926 = vshrl.u32 %v925, 7
      %v927 = vsub.s32 3, %v926
      %v928 = vrot.slane %v229, %v927
      %v929 = vlaneseq
      %v930 = vshrl.u32 %v929, 7
      %v931 = vsub.s32 4, %v930
      %v932 = vrot.slane %v229, %v931
      %v933 = vlaneseq
      %v934 = vshrl.u32 %v933, 7
      %v935 = vsub.s32 5, %v934
      %v936 = vrot.slane %v229, %v935
      %v937 = vlaneseq
      %v938 = vshrl.u32 %v937, 7
      %v939 = vsub.s32 6, %v938
      %v940 = vrot.slane %v229, %v939
      %v941 = vlaneseq
      %v942 = vshrl.u32 %v941, 7
      %v943 = vsub.s32 7, %v942
      %v944 = vrot.slane %v229, %v943
      %v945 = vlaneseq
      %v946 = vshrl.u32 %v945, 7
      %v947 = vsub.s32 0, %v946
      %v948 = vrot.slane %v230, %v947
      %v949 = vlaneseq
      %v950 = vshrl.u32 %v949, 7
      %v951 = vsub.s32 1, %v950
      %v952 = vrot.slane %v230, %v951
      %v953 = vlaneseq
      %v954 = vshrl.u32 %v953, 7
      %v955 = vsub.s32 2, %v954
      %v956 = vrot.slane %v230, %v955
      %v957 = vlaneseq
      %v958 = vshrl.u32 %v957, 7
      %v959 = vsub.s32 3, %v958
      %v960 = vrot.slane %v230, %v959
      %v961 = vlaneseq
      %v962 = vshrl.u32 %v961, 7
      %v963 = vsub.s32 4, %v962
      %v964 = vrot.slane %v230, %v963
      %v965 = vlaneseq
      %v966 = vshrl.u32 %v965, 7
      %v967 = vsub.s32 5, %v966
      %v968 = vrot.slane %v230, %v967
      %v969 = vlaneseq
      %v970 = vshrl.u32 %v969, 7
      %v971 = vsub.s32 6, %v970
      %v972 = vrot.slane %v230, %v971
      %v973 = vlaneseq
      %v974 = vshrl.u32 %v973, 7
      %v975 = vsub.s32 7, %v974
      %v976 = vrot.slane %v230, %v975
      %v977 = vlaneseq
      %v978 = vshrl.u32 %v977, 7
      %v979 = vsub.s32 0, %v978
      %v980 = vrot.slane %v231, %v979
      %v981 = vlaneseq
      %v982 = vshrl.u32 %v981, 7
      %v983 = vsub.s32 1, %v982
      %v984 = vrot.slane %v231, %v983
      %v985 = vlaneseq
      %v986 = vshrl.u32 %v985, 7
      %v987 = vsub.s32 2, %v986
      %v988 = vrot.slane %v231, %v987
      %v989 = vlaneseq
      %v990 = vshrl.u32 %v989, 7
      %v991 = vsub.s32 3, %v990
      %v992 = vrot.slane %v231, %v991
      %v993 = vlaneseq
      %v994 = vshrl.u32 %v993, 7
      %v995 = vsub.s32 4, %v994
      %v996 = vrot.slane %v231, %v995
      %v997 = vlaneseq
      %v998 = vshrl.u32 %v997, 7
      %v999 = vsub.s32 5, %v998
      %v1000 = vrot.slane %v231, %v999
      %v1001 = vlaneseq
      %v1002 = vshrl.u32 %v1001, 7
      %v1003 = vsub.s32 6, %v1002
      %v1004 = vrot.slane %v231, %v1003
      %v1005 = vlaneseq
      %v1006 = vshrl.u32 %v1005, 7
      %v1007 = vsub.s32 7, %v1006
      %v1008 = vrot.slane %v231, %v1007
      %v1009 = vlaneseq
      %v1010 = vshrl.u32 %v1009, 7
      %v1011 = vsub.s32 0, %v1010
      %v1012 = vrot.slane %v232, %v1011
      %v1013 = vlaneseq
      %v1014 = vshrl.u32 %v1013, 7
      %v1015 = vsub.s32 1, %v1014
      %v1016 = vrot.slane %v232, %v1015
      %v1017 = vlaneseq
      %v1018 = vshrl.u32 %v1017, 7
      %v1019 = vsub.s32 2, %v1018
      %v1020 = vrot.slane %v232, %v1019
      %v1021 = vlaneseq
      %v1022 = vshrl.u32 %v1021, 7
      %v1023 = vsub.s32 3, %v1022
      %v1024 = vrot.slane %v232, %v1023
      %v1025 = vlaneseq
      %v1026 = vshrl.u32 %v1025, 7
      %v1027 = vsub.s32 4, %v1026
      %v1028 = vrot.slane %v232, %v1027
      %v1029 = vlaneseq
      %v1030 = vshrl.u32 %v1029, 7
      %v1031 = vsub.s32 5, %v1030
      %v1032 = vrot.slane %v232, %v1031
      %v1033 = vlaneseq
      %v1034 = vshrl.u32 %v1033, 7
      %v1035 = vsub.s32 6, %v1034
      %v1036 = vrot.slane %v232, %v1035
      %v1037 = vlaneseq
      %v1038 = vshrl.u32 %v1037, 7
      %v1039 = vsub.s32 7, %v1038
      %v1040 = vrot.slane %v232, %v1039
      %v1041 = vlaneseq
      %v1042 = vshrl.u32 %v1041, 7
      %v1043 = vsub.s32 0, %v1042
      %v1044 = vrot.slane %v233, %v1043
      %v1045 = vlaneseq
      %v1046 = vshrl.u32 %v1045, 7
      %v1047 = vsub.s32 1, %v1046
      %v1048 = vrot.slane %v233, %v1047
      %v1049 = vlaneseq
      %v1050 = vshrl.u32 %v1049, 7
      %v1051 = vsub.s32 2, %v1050
      %v1052 = vrot.slane %v233, %v1051
      %v1053 = vlaneseq
      %v1054 = vshrl.u32 %v1053, 7
      %v1055 = vsub.s32 3, %v1054
      %v1056 = vrot.slane %v233, %v1055
      %v1057 = vlaneseq
      %v1058 = vshrl.u32 %v1057, 7
      %v1059 = vsub.s32 4, %v1058
      %v1060 = vrot.slane %v233, %v1059
      %v1061 = vlaneseq
      %v1062 = vshrl.u32 %v1061, 7
      %v1063 = vsub.s32 5, %v1062
      %v1064 = vrot.slane %v233, %v1063
      %v1065 = vlaneseq
      %v1066 = vshrl.u32 %v1065, 7
      %v1067 = vsub.s32 6, %v1066
      %v1068 = vrot.slane %v233, %v1067
      %v1069 = vlaneseq
      %v1070 = vshrl.u32 %v1069, 7
      %v1071 = vsub.s32 7, %v1070
      %v1072 = vrot.slane %v233, %v1071
      %v1073 = vlaneseq
      %v1074 = vshrl.u32 %v1073, 7
      %v1075 = vsub.s32 0, %v1074
      %v1076 = vrot.slane %v234, %v1075
      %v1077 = vlaneseq
      %v1078 = vshrl.u32 %v1077, 7
      %v1079 = vsub.s32 1, %v1078
      %v1080 = vrot.slane %v234, %v1079
      %v1081 = vlaneseq
      %v1082 = vshrl.u32 %v1081, 7
      %v1083 = vsub.s32 2, %v1082
      %v1084 = vrot.slane %v234, %v1083
      %v1085 = vlaneseq
      %v1086 = vshrl.u32 %v1085, 7
      %v1087 = vsub.s32 3, %v1086
      %v1088 = vrot.slane %v234, %v1087
      %v1089 = vlaneseq
      %v1090 = vshrl.u32 %v1089, 7
      %v1091 = vsub.s32 4, %v1090
      %v1092 = vrot.slane %v234, %v1091
      %v1093 = vlaneseq
      %v1094 = vshrl.u32 %v1093, 7
      %v1095 = vsub.s32 5, %v1094
      %v1096 = vrot.slane %v234, %v1095
      %v1097 = vlaneseq
      %v1098 = vshrl.u32 %v1097, 7
      %v1099 = vsub.s32 6, %v1098
      %v1100 = vrot.slane %v234, %v1099
      %v1101 = vlaneseq
      %v1102 = vshrl.u32 %v1101, 7
      %v1103 = vsub.s32 7, %v1102
      %v1104 = vrot.slane %v234, %v1103
      %v1105 = vlaneseq
      %v1106 = vshrl.u32 %v1105, 7
      %v1107 = vsub.s32 0, %v1106
      %v1108 = vrot.slane %v235, %v1107
      %v1109 = vlaneseq
      %v1110 = vshrl.u32 %v1109, 7
      %v1111 = vsub.s32 1, %v1110
      %v1112 = vrot.slane %v235, %v1111
      %v1113 = vlaneseq
      %v1114 = vshrl.u32 %v1113, 7
      %v1115 = vsub.s32 2, %v1114
      %v1116 = vrot.slane %v235, %v1115
      %v1117 = vlaneseq
      %v1118 = vshrl.u32 %v1117, 7
      %v1119 = vsub.s32 3, %v1118
      %v1120 = vrot.slane %v235, %v1119
      %v1121 = vlaneseq
      %v1122 = vshrl.u32 %v1121, 7
      %v1123 = vsub.s32 4, %v1122
      %v1124 = vrot.slane %v235, %v1123
      %v1125 = vlaneseq
      %v1126 = vshrl.u32 %v1125, 7
      %v1127 = vsub.s32 5, %v1126
      %v1128 = vrot.slane %v235, %v1127
      %v1129 = vlaneseq
      %v1130 = vshrl.u32 %v1129, 7
      %v1131 = vsub.s32 6, %v1130
      %v1132 = vrot.slane %v235, %v1131
      %v1133 = vlaneseq
      %v1134 = vshrl.u32 %v1133, 7
      %v1135 = vsub.s32 7, %v1134
      %v1136 = vrot.slane %v235, %v1135
      %v1137 = vlaneseq
      %v1138 = vshrl.u32 %v1137, 7
      %v1139 = vsub.s32 0, %v1138
      %v1140 = vrot.slane %v236, %v1139
      %v1141 = vlaneseq
      %v1142 = vshrl.u32 %v1141, 7
      %v1143 = vsub.s32 1, %v1142
      %v1144 = vrot.slane %v236, %v1143
      %v1145 = vlaneseq
      %v1146 = vshrl.u32 %v1145, 7
      %v1147 = vsub.s32 2, %v1146
      %v1148 = vrot.slane %v236, %v1147
      %v1149 = vlaneseq
      %v1150 = vshrl.u32 %v1149, 7
      %v1151 = vsub.s32 3, %v1150
      %v1152 = vrot.slane %v236, %v1151
      %v1153 = vlaneseq
      %v1154 = vshrl.u32 %v1153, 7
      %v1155 = vsub.s32 4, %v1154
      %v1156 = vrot.slane %v236, %v1155
      %v1157 = vlaneseq
      %v1158 = vshrl.u32 %v1157, 7
      %v1159 = vsub.s32 5, %v1158
      %v1160 = vrot.slane %v236, %v1159
      %v1161 = vlaneseq
      %v1162 = vshrl.u32 %v1161, 7
      %v1163 = vsub.s32 6, %v1162
      %v1164 = vrot.slane %v236, %v1163
      %v1165 = vlaneseq
      %v1166 = vshrl.u32 %v1165, 7
      %v1167 = vsub.s32 7, %v1166
      %v1168 = vrot.slane %v236, %v1167
      %v1169 = vlaneseq
      %v1170 = vshrl.u32 %v1169, 7
      %v1171 = vsub.s32 0, %v1170
      %v1172 = vrot.slane %v237, %v1171
      %v1173 = vlaneseq
      %v1174 = vshrl.u32 %v1173, 7
      %v1175 = vsub.s32 1, %v1174
      %v1176 = vrot.slane %v237, %v1175
      %v1177 = vlaneseq
      %v1178 = vshrl.u32 %v1177, 7
      %v1179 = vsub.s32 2, %v1178
      %v1180 = vrot.slane %v237, %v1179
      %v1181 = vlaneseq
      %v1182 = vshrl.u32 %v1181, 7
      %v1183 = vsub.s32 3, %v1182
      %v1184 = vrot.slane %v237, %v1183
      %v1185 = vlaneseq
      %v1186 = vshrl.u32 %v1185, 7
      %v1187 = vsub.s32 4, %v1186
      %v1188 = vrot.slane %v237, %v1187
      %v1189 = vlaneseq
      %v1190 = vshrl.u32 %v1189, 7
      %v1191 = vsub.s32 5, %v1190
      %v1192 = vrot.slane %v237, %v1191
      %v1193 = vlaneseq
      %v1194 = vshrl.u32 %v1193, 7
      %v1195 = vsub.s32 6, %v1194
      %v1196 = vrot.slane %v237, %v1195
      %v1197 = vlaneseq
      %v1198 = vshrl.u32 %v1197, 7
      %v1199 = vsub.s32 7, %v1198
      %v1200 = vrot.slane %v237, %v1199
      %v1201 = vlaneseq
      %v1202 = vshrl.u32 %v1201, 7
      %v1203 = vsub.s32 0, %v1202
      %v1204 = vrot.slane %v238, %v1203
      %v1205 = vlaneseq
      %v1206 = vshrl.u32 %v1205, 7
      %v1207 = vsub.s32 1, %v1206
      %v1208 = vrot.slane %v238, %v1207
      %v1209 = vlaneseq
      %v1210 = vshrl.u32 %v1209, 7
      %v1211 = vsub.s32 2, %v1210
      %v1212 = vrot.slane %v238, %v1211
      %v1213 = vlaneseq
      %v1214 = vshrl.u32 %v1213, 7
      %v1215 = vsub.s32 3, %v1214
      %v1216 = vrot.slane %v238, %v1215
      %v1217 = vlaneseq
      %v1218 = vshrl.u32 %v1217, 7
      %v1219 = vsub.s32 4, %v1218
      %v1220 = vrot.slane %v238, %v1219
      %v1221 = vlaneseq
      %v1222 = vshrl.u32 %v1221, 7
      %v1223 = vsub.s32 5, %v1222
      %v1224 = vrot.slane %v238, %v1223
      %v1225 = vlaneseq
      %v1226 = vshrl.u32 %v1225, 7
      %v1227 = vsub.s32 6, %v1226
      %v1228 = vrot.slane %v238, %v1227
      %v1229 = vlaneseq
      %v1230 = vshrl.u32 %v1229, 7
      %v1231 = vsub.s32 7, %v1230
      %v1232 = vrot.slane %v238, %v1231
      %v1233 = vlaneseq
      %v1234 = vshrl.u32 %v1233, 7
      %v1235 = vsub.s32 0, %v1234
      %v1236 = vrot.slane %v239, %v1235
      %v1237 = vlaneseq
      %v1238 = vshrl.u32 %v1237, 7
      %v1239 = vsub.s32 1, %v1238
      %v1240 = vrot.slane %v239, %v1239
      %v1241 = vlaneseq
      %v1242 = vshrl.u32 %v1241, 7
      %v1243 = vsub.s32 2, %v1242
      %v1244 = vrot.slane %v239, %v1243
      %v1245 = vlaneseq
      %v1246 = vshrl.u32 %v1245, 7
      %v1247 = vsub.s32 3, %v1246
      %v1248 = vrot.slane %v239, %v1247
      %v1249 = vlaneseq
      %v1250 = vshrl.u32 %v1249, 7
      %v1251 = vsub.s32 4, %v1250
      %v1252 = vrot.slane %v239, %v1251
      %v1253 = vlaneseq
      %v1254 = vshrl.u32 %v1253, 7
      %v1255 = vsub.s32 5, %v1254
      %v1256 = vrot.slane %v239, %v1255
      %v1257 = vlaneseq
      %v1258 = vshrl.u32 %v1257, 7
      %v1259 = vsub.s32 6, %v1258
      %v1260 = vrot.slane %v239, %v1259
      %v1261 = vlaneseq
      %v1262 = vshrl.u32 %v1261, 7
      %v1263 = vsub.s32 7, %v1262
      %v1264 = vrot.slane %v239, %v1263
      %v1265 = vlaneseq
      %v1266 = vshrl.u32 %v1265, 7
      %v1267 = vsub.s32 0, %v1266
      %v1268 = vrot.slane %v240, %v1267
      %v1269 = vlaneseq
      %v1270 = vshrl.u32 %v1269, 7
      %v1271 = vsub.s32 1, %v1270
      %v1272 = vrot.slane %v240, %v1271
      %v1273 = vlaneseq
      %v1274 = vshrl.u32 %v1273, 7
      %v1275 = vsub.s32 2, %v1274
      %v1276 = vrot.slane %v240, %v1275
      %v1277 = vlaneseq
      %v1278 = vshrl.u32 %v1277, 7
      %v1279 = vsub.s32 3, %v1278
      %v1280 = vrot.slane %v240, %v1279
      %v1281 = vlaneseq
      %v1282 = vshrl.u32 %v1281, 7
      %v1283 = vsub.s32 4, %v1282
      %v1284 = vrot.slane %v240, %v1283
      %v1285 = vlaneseq
      %v1286 = vshrl.u32 %v1285, 7
      %v1287 = vsub.s32 5, %v1286
      %v1288 = vrot.slane %v240, %v1287
      %v1289 = vlaneseq
      %v1290 = vshrl.u32 %v1289, 7
      %v1291 = vsub.s32 6, %v1290
      %v1292 = vrot.slane %v240, %v1291
      %v1293 = vlaneseq
      %v1294 = vshrl.u32 %v1293, 7
      %v1295 = vsub.s32 7, %v1294
      %v1296 = vrot.slane %v240, %v1295
      %v1297 = vcombine.low %v276, %v280
      %v1298 = vcombine.low %v284, %v288
      %v1299 = vcombine.low %v292, %v296
      %v1300 = vcombine.low %v300, %v304
      %v1302 = vunpack.c.l.s4 1966171168
      %v1303 = vunpack.c.0.s8 %v1302
      %v1304 = vlaneseq
      %v1305 = vshrl.u32 %v1304, 7
      %v1306 = vsub.s32 %v1303, %v1305
      %v1307 = vrot.slane %v1297, %v1306
      %v1309 = vunpack.c.l.s4 1966171168
      %v1310 = vunpack.c.0.s8 %v1309
      %v1311 = vlaneseq
      %v1312 = vshrl.u32 %v1311, 7
      %v1313 = vsub.s32 %v1310, %v1312
      %v1314 = vrot.slane %v1298, %v1313
      %v1316 = vunpack.c.l.s4 1966171168
      %v1317 = vunpack.c.0.s8 %v1316
      %v1318 = vlaneseq
      %v1319 = vshrl.u32 %v1318, 7
      %v1320 = vsub.s32 %v1317, %v1319
      %v1321 = vrot.slane %v1299, %v1320
      %v1323 = vunpack.c.l.s4 1966171168
      %v1324 = vunpack.c.0.s8 %v1323
      %v1325 = vlaneseq
      %v1326 = vshrl.u32 %v1325, 7
      %v1327 = vsub.s32 %v1324, %v1326
      %v1328 = vrot.slane %v1300, %v1327
      %v1329 = vcombine.low %v1307, %v1314
      %v1330 = vcombine.low %v1321, %v1328
      %v1332 = vunpack.c.l.s4 1966171168
      %v1333 = vunpack.c.0.s8 %v1332
      %v1334 = vlaneseq
      %v1335 = vshrl.u32 %v1334, 7
      %v1336 = vsub.s32 %v1333, %v1335
      %v1337 = vrot.slane %v1329, %v1336
      %v1339 = vunpack.c.l.s4 1966171168
      %v1340 = vunpack.c.0.s8 %v1339
      %v1341 = vlaneseq
      %v1342 = vshrl.u32 %v1341, 7
      %v1343 = vsub.s32 %v1340, %v1342
      %v1344 = vrot.slane %v1330, %v1343
      %v1345 = vcombine.low %v1337, %v1344
      %v1346 = vcombine.low %v308, %v312
      %v1347 = vcombine.low %v316, %v320
      %v1348 = vcombine.low %v324, %v328
      %v1349 = vcombine.low %v332, %v336
      %v1351 = vunpack.c.l.s4 1966171168
      %v1352 = vunpack.c.0.s8 %v1351
      %v1353 = vlaneseq
      %v1354 = vshrl.u32 %v1353, 7
      %v1355 = vsub.s32 %v1352, %v1354
      %v1356 = vrot.slane %v1346, %v1355
      %v1358 = vunpack.c.l.s4 1966171168
      %v1359 = vunpack.c.0.s8 %v1358
      %v1360 = vlaneseq
      %v1361 = vshrl.u32 %v1360, 7
      %v1362 = vsub.s32 %v1359, %v1361
      %v1363 = vrot.slane %v1347, %v1362
      %v1365 = vunpack.c.l.s4 1966171168
      %v1366 = vunpack.c.0.s8 %v1365
      %v1367 = vlaneseq
      %v1368 = vshrl.u32 %v1367, 7
      %v1369 = vsub.s32 %v1366, %v1368
      %v1370 = vrot.slane %v1348, %v1369
      %v1372 = vunpack.c.l.s4 1966171168
      %v1373 = vunpack.c.0.s8 %v1372
      %v1374 = vlaneseq
      %v1375 = vshrl.u32 %v1374, 7
      %v1376 = vsub.s32 %v1373, %v1375
      %v1377 = vrot.slane %v1349, %v1376
      %v1378 = vcombine.low %v1356, %v1363
      %v1379 = vcombine.low %v1370, %v1377
      %v1381 = vunpack.c.l.s4 1966171168
      %v1382 = vunpack.c.0.s8 %v1381
      %v1383 = vlaneseq
      %v1384 = vshrl.u32 %v1383, 7
      %v1385 = vsub.s32 %v1382, %v1384
      %v1386 = vrot.slane %v1378, %v1385
      %v1388 = vunpack.c.l.s4 1966171168
      %v1389 = vunpack.c.0.s8 %v1388
      %v1390 = vlaneseq
      %v1391 = vshrl.u32 %v1390, 7
      %v1392 = vsub.s32 %v1389, %v1391
      %v1393 = vrot.slane %v1379, %v1392
      %v1394 = vcombine.low %v1386, %v1393
      %v1395 = vcombine.low %v340, %v344
      %v1396 = vcombine.low %v348, %v352
      %v1397 = vcombine.low %v356, %v360
      %v1398 = vcombine.low %v364, %v368
      %v1400 = vunpack.c.l.s4 1966171168
      %v1401 = vunpack.c.0.s8 %v1400
      %v1402 = vlaneseq
      %v1403 = vshrl.u32 %v1402, 7
      %v1404 = vsub.s32 %v1401, %v1403
      %v1405 = vrot.slane %v1395, %v1404
      %v1407 = vunpack.c.l.s4 1966171168
      %v1408 = vunpack.c.0.s8 %v1407
      %v1409 = vlaneseq
      %v1410 = vshrl.u32 %v1409, 7
      %v1411 = vsub.s32 %v1408, %v1410
      %v1412 = vrot.slane %v1396, %v1411
      %v1414 = vunpack.c.l.s4 1966171168
      %v1415 = vunpack.c.0.s8 %v1414
      %v1416 = vlaneseq
      %v1417 = vshrl.u32 %v1416, 7
      %v1418 = vsub.s32 %v1415, %v1417
      %v1419 = vrot.slane %v1397, %v1418
      %v1421 = vunpack.c.l.s4 1966171168
      %v1422 = vunpack.c.0.s8 %v1421
      %v1423 = vlaneseq
      %v1424 = vshrl.u32 %v1423, 7
      %v1425 = vsub.s32 %v1422, %v1424
      %v1426 = vrot.slane %v1398, %v1425
      %v1427 = vcombine.low %v1405, %v1412
      %v1428 = vcombine.low %v1419, %v1426
      %v1430 = vunpack.c.l.s4 1966171168
      %v1431 = vunpack.c.0.s8 %v1430
      %v1432 = vlaneseq
      %v1433 = vshrl.u32 %v1432, 7
      %v1434 = vsub.s32 %v1431, %v1433
      %v1435 = vrot.slane %v1427, %v1434
      %v1437 = vunpack.c.l.s4 1966171168
      %v1438 = vunpack.c.0.s8 %v1437
      %v1439 = vlaneseq
      %v1440 = vshrl.u32 %v1439, 7
      %v1441 = vsub.s32 %v1438, %v1440
      %v1442 = vrot.slane %v1428, %v1441
      %v1443 = vcombine.low %v1435, %v1442
      %v1444 = vcombine.low %v372, %v376
      %v1445 = vcombine.low %v380, %v384
      %v1446 = vcombine.low %v388, %v392
      %v1447 = vcombine.low %v396, %v400
      %v1449 = vunpack.c.l.s4 1966171168
      %v1450 = vunpack.c.0.s8 %v1449
      %v1451 = vlaneseq
      %v1452 = vshrl.u32 %v1451, 7
      %v1453 = vsub.s32 %v1450, %v1452
      %v1454 = vrot.slane %v1444, %v1453
      %v1456 = vunpack.c.l.s4 1966171168
      %v1457 = vunpack.c.0.s8 %v1456
      %v1458 = vlaneseq
      %v1459 = vshrl.u32 %v1458, 7
      %v1460 = vsub.s32 %v1457, %v1459
      %v1461 = vrot.slane %v1445, %v1460
      %v1463 = vunpack.c.l.s4 1966171168
      %v1464 = vunpack.c.0.s8 %v1463
      %v1465 = vlaneseq
      %v1466 = vshrl.u32 %v1465, 7
      %v1467 = vsub.s32 %v1464, %v1466
      %v1468 = vrot.slane %v1446, %v1467
      %v1470 = vunpack.c.l.s4 1966171168
      %v1471 = vunpack.c.0.s8 %v1470
      %v1472 = vlaneseq
      %v1473 = vshrl.u32 %v1472, 7
      %v1474 = vsub.s32 %v1471, %v1473
      %v1475 = vrot.slane %v1447, %v1474
      %v1476 = vcombine.low %v1454, %v1461
      %v1477 = vcombine.low %v1468, %v1475
      %v1479 = vunpack.c.l.s4 1966171168
      %v1480 = vunpack.c.0.s8 %v1479
      %v1481 = vlaneseq
      %v1482 = vshrl.u32 %v1481, 7
      %v1483 = vsub.s32 %v1480, %v1482
      %v1484 = vrot.slane %v1476, %v1483
      %v1486 = vunpack.c.l.s4 1966171168
      %v1487 = vunpack.c.0.s8 %v1486
      %v1488 = vlaneseq
      %v1489 = vshrl.u32 %v1488, 7
      %v1490 = vsub.s32 %v1487, %v1489
      %v1491 = vrot.slane %v1477, %v1490
      %v1492 = vcombine.low %v1484, %v1491
      %v1493 = vcombine.low %v404, %v408
      %v1494 = vcombine.low %v412, %v416
      %v1495 = vcombine.low %v420, %v424
      %v1496 = vcombine.low %v428, %v432
      %v1498 = vunpack.c.l.s4 1966171168
      %v1499 = vunpack.c.0.s8 %v1498
      %v1500 = vlaneseq
      %v1501 = vshrl.u32 %v1500, 7
      %v1502 = vsub.s32 %v1499, %v1501
      %v1503 = vrot.slane %v1493, %v1502
      %v1505 = vunpack.c.l.s4 1966171168
      %v1506 = vunpack.c.0.s8 %v1505
      %v1507 = vlaneseq
      %v1508 = vshrl.u32 %v1507, 7
      %v1509 = vsub.s32 %v1506, %v1508
      %v1510 = vrot.slane %v1494, %v1509
      %v1512 = vunpack.c.l.s4 1966171168
      %v1513 = vunpack.c.0.s8 %v1512
      %v1514 = vlaneseq
      %v1515 = vshrl.u32 %v1514, 7
      %v1516 = vsub.s32 %v1513, %v1515
      %v1517 = vrot.slane %v1495, %v1516
      %v1519 = vunpack.c.l.s4 1966171168
      %v1520 = vunpack.c.0.s8 %v1519
      %v1521 = vlaneseq
      %v1522 = vshrl.u32 %v1521, 7
      %v1523 = vsub.s32 %v1520, %v1522
      %v1524 = vrot.slane %v1496, %v1523
      %v1525 = vcombine.low %v1503, %v1510
      %v1526 = vcombine.low %v1517, %v1524
      %v1528 = vunpack.c.l.s4 1966171168
      %v1529 = vunpack.c.0.s8 %v1528
      %v1530 = vlaneseq
      %v1531 = vshrl.u32 %v1530, 7
      %v1532 = vsub.s32 %v1529, %v1531
      %v1533 = vrot.slane %v1525, %v1532
      %v1535 = vunpack.c.l.s4 1966171168
      %v1536 = vunpack.c.0.s8 %v1535
      %v1537 = vlaneseq
      %v1538 = vshrl.u32 %v1537, 7
      %v1539 = vsub.s32 %v1536, %v1538
      %v1540 = vrot.slane %v1526, %v1539
      %v1541 = vcombine.low %v1533, %v1540
      %v1542 = vcombine.low %v436, %v440
      %v1543 = vcombine.low %v444, %v448
      %v1544 = vcombine.low %v452, %v456
      %v1545 = vcombine.low %v460, %v464
      %v1547 = vunpack.c.l.s4 1966171168
      %v1548 = vunpack.c.0.s8 %v1547
      %v1549 = vlaneseq
      %v1550 = vshrl.u32 %v1549, 7
      %v1551 = vsub.s32 %v1548, %v1550
      %v1552 = vrot.slane %v1542, %v1551
      %v1554 = vunpack.c.l.s4 1966171168
      %v1555 = vunpack.c.0.s8 %v1554
      %v1556 = vlaneseq
      %v1557 = vshrl.u32 %v1556, 7
      %v1558 = vsub.s32 %v1555, %v1557
      %v1559 = vrot.slane %v1543, %v1558
      %v1561 = vunpack.c.l.s4 1966171168
      %v1562 = vunpack.c.0.s8 %v1561
      %v1563 = vlaneseq
      %v1564 = vshrl.u32 %v1563, 7
      %v1565 = vsub.s32 %v1562, %v1564
      %v1566 = vrot.slane %v1544, %v1565
      %v1568 = vunpack.c.l.s4 1966171168
      %v1569 = vunpack.c.0.s8 %v1568
      %v1570 = vlaneseq
      %v1571 = vshrl.u32 %v1570, 7
      %v1572 = vsub.s32 %v1569, %v1571
      %v1573 = vrot.slane %v1545, %v1572
      %v1574 = vcombine.low %v1552, %v1559
      %v1575 = vcombine.low %v1566, %v1573
      %v1577 = vunpack.c.l.s4 1966171168
      %v1578 = vunpack.c.0.s8 %v1577
      %v1579 = vlaneseq
      %v1580 = vshrl.u32 %v1579, 7
      %v1581 = vsub.s32 %v1578, %v1580
      %v1582 = vrot.slane %v1574, %v1581
      %v1584 = vunpack.c.l.s4 1966171168
      %v1585 = vunpack.c.0.s8 %v1584
      %v1586 = vlaneseq
      %v1587 = vshrl.u32 %v1586, 7
      %v1588 = vsub.s32 %v1585, %v1587
      %v1589 = vrot.slane %v1575, %v1588
      %v1590 = vcombine.low %v1582, %v1589
      %v1591 = vcombine.low %v468, %v472
      %v1592 = vcombine.low %v476, %v480
      %v1593 = vcombine.low %v484, %v488
      %v1594 = vcombine.low %v492, %v496
      %v1596 = vunpack.c.l.s4 1966171168
      %v1597 = vunpack.c.0.s8 %v1596
      %v1598 = vlaneseq
      %v1599 = vshrl.u32 %v1598, 7
      %v1600 = vsub.s32 %v1597, %v1599
      %v1601 = vrot.slane %v1591, %v1600
      %v1603 = vunpack.c.l.s4 1966171168
      %v1604 = vunpack.c.0.s8 %v1603
      %v1605 = vlaneseq
      %v1606 = vshrl.u32 %v1605, 7
      %v1607 = vsub.s32 %v1604, %v1606
      %v1608 = vrot.slane %v1592, %v1607
      %v1610 = vunpack.c.l.s4 1966171168
      %v1611 = vunpack.c.0.s8 %v1610
      %v1612 = vlaneseq
      %v1613 = vshrl.u32 %v1612, 7
      %v1614 = vsub.s32 %v1611, %v1613
      %v1615 = vrot.slane %v1593, %v1614
      %v1617 = vunpack.c.l.s4 1966171168
      %v1618 = vunpack.c.0.s8 %v1617
      %v1619 = vlaneseq
      %v1620 = vshrl.u32 %v1619, 7
      %v1621 = vsub.s32 %v1618, %v1620
      %v1622 = vrot.slane %v1594, %v1621
      %v1623 = vcombine.low %v1601, %v1608
      %v1624 = vcombine.low %v1615, %v1622
      %v1626 = vunpack.c.l.s4 1966171168
      %v1627 = vunpack.c.0.s8 %v1626
      %v1628 = vlaneseq
      %v1629 = vshrl.u32 %v1628, 7
      %v1630 = vsub.s32 %v1627, %v1629
      %v1631 = vrot.slane %v1623, %v1630
      %v1633 = vunpack.c.l.s4 1966171168
      %v1634 = vunpack.c.0.s8 %v1633
      %v1635 = vlaneseq
      %v1636 = vshrl.u32 %v1635, 7
      %v1637 = vsub.s32 %v1634, %v1636
      %v1638 = vrot.slane %v1624, %v1637
      %v1639 = vcombine.low %v1631, %v1638
      %v1640 = vcombine.low %v500, %v504
      %v1641 = vcombine.low %v508, %v512
      %v1642 = vcombine.low %v516, %v520
      %v1643 = vcombine.low %v524, %v528
      %v1645 = vunpack.c.l.s4 1966171168
      %v1646 = vunpack.c.0.s8 %v1645
      %v1647 = vlaneseq
      %v1648 = vshrl.u32 %v1647, 7
      %v1649 = vsub.s32 %v1646, %v1648
      %v1650 = vrot.slane %v1640, %v1649
      %v1652 = vunpack.c.l.s4 1966171168
      %v1653 = vunpack.c.0.s8 %v1652
      %v1654 = vlaneseq
      %v1655 = vshrl.u32 %v1654, 7
      %v1656 = vsub.s32 %v1653, %v1655
      %v1657 = vrot.slane %v1641, %v1656
      %v1659 = vunpack.c.l.s4 1966171168
      %v1660 = vunpack.c.0.s8 %v1659
      %v1661 = vlaneseq
      %v1662 = vshrl.u32 %v1661, 7
      %v1663 = vsub.s32 %v1660, %v1662
      %v1664 = vrot.slane %v1642, %v1663
      %v1666 = vunpack.c.l.s4 1966171168
      %v1667 = vunpack.c.0.s8 %v1666
      %v1668 = vlaneseq
      %v1669 = vshrl.u32 %v1668, 7
      %v1670 = vsub.s32 %v1667, %v1669
      %v1671 = vrot.slane %v1643, %v1670
      %v1672 = vcombine.low %v1650, %v1657
      %v1673 = vcombine.low %v1664, %v1671
      %v1675 = vunpack.c.l.s4 1966171168
      %v1676 = vunpack.c.0.s8 %v1675
      %v1677 = vlaneseq
      %v1678 = vshrl.u32 %v1677, 7
      %v1679 = vsub.s32 %v1676, %v1678
      %v1680 = vrot.slane %v1672, %v1679
      %v1682 = vunpack.c.l.s4 1966171168
      %v1683 = vunpack.c.0.s8 %v1682
      %v1684 = vlaneseq
      %v1685 = vshrl.u32 %v1684, 7
      %v1686 = vsub.s32 %v1683, %v1685
      %v1687 = vrot.slane %v1673, %v1686
      %v1688 = vcombine.low %v1680, %v1687
      %v1689 = vcombine.low %v532, %v536
      %v1690 = vcombine.low %v540, %v544
      %v1691 = vcombine.low %v548, %v552
      %v1692 = vcombine.low %v556, %v560
      %v1694 = vunpack.c.l.s4 1966171168
      %v1695 = vunpack.c.0.s8 %v1694
      %v1696 = vlaneseq
      %v1697 = vshrl.u32 %v1696, 7
      %v1698 = vsub.s32 %v1695, %v1697
      %v1699 = vrot.slane %v1689, %v1698
      %v1701 = vunpack.c.l.s4 1966171168
      %v1702 = vunpack.c.0.s8 %v1701
      %v1703 = vlaneseq
      %v1704 = vshrl.u32 %v1703, 7
      %v1705 = vsub.s32 %v1702, %v1704
      %v1706 = vrot.slane %v1690, %v1705
      %v1708 = vunpack.c.l.s4 1966171168
      %v1709 = vunpack.c.0.s8 %v1708
      %v1710 = vlaneseq
      %v1711 = vshrl.u32 %v1710, 7
      %v1712 = vsub.s32 %v1709, %v1711
      %v1713 = vrot.slane %v1691, %v1712
      %v1715 = vunpack.c.l.s4 1966171168
      %v1716 = vunpack.c.0.s8 %v1715
      %v1717 = vlaneseq
      %v1718 = vshrl.u32 %v1717, 7
      %v1719 = vsub.s32 %v1716, %v1718
      %v1720 = vrot.slane %v1692, %v1719
      %v1721 = vcombine.low %v1699, %v1706
      %v1722 = vcombine.low %v1713, %v1720
      %v1724 = vunpack.c.l.s4 1966171168
      %v1725 = vunpack.c.0.s8 %v1724
      %v1726 = vlaneseq
      %v1727 = vshrl.u32 %v1726, 7
      %v1728 = vsub.s32 %v1725, %v1727
      %v1729 = vrot.slane %v1721, %v1728
      %v1731 = vunpack.c.l.s4 1966171168
      %v1732 = vunpack.c.0.s8 %v1731
      %v1733 = vlaneseq
      %v1734 = vshrl.u32 %v1733, 7
      %v1735 = vsub.s32 %v1732, %v1734
      %v1736 = vrot.slane %v1722, %v1735
      %v1737 = vcombine.low %v1729, %v1736
      %v1738 = vcombine.low %v564, %v568
      %v1739 = vcombine.low %v572, %v576
      %v1740 = vcombine.low %v580, %v584
      %v1741 = vcombine.low %v588, %v592
      %v1743 = vunpack.c.l.s4 1966171168
      %v1744 = vunpack.c.0.s8 %v1743
      %v1745 = vlaneseq
      %v1746 = vshrl.u32 %v1745, 7
      %v1747 = vsub.s32 %v1744, %v1746
      %v1748 = vrot.slane %v1738, %v1747
      %v1750 = vunpack.c.l.s4 1966171168
      %v1751 = vunpack.c.0.s8 %v1750
      %v1752 = vlaneseq
      %v1753 = vshrl.u32 %v1752, 7
      %v1754 = vsub.s32 %v1751, %v1753
      %v1755 = vrot.slane %v1739, %v1754
      %v1757 = vunpack.c.l.s4 1966171168
      %v1758 = vunpack.c.0.s8 %v1757
      %v1759 = vlaneseq
      %v1760 = vshrl.u32 %v1759, 7
      %v1761 = vsub.s32 %v1758, %v1760
      %v1762 = vrot.slane %v1740, %v1761
      %v1764 = vunpack.c.l.s4 1966171168
      %v1765 = vunpack.c.0.s8 %v1764
      %v1766 = vlaneseq
      %v1767 = vshrl.u32 %v1766, 7
      %v1768 = vsub.s32 %v1765, %v1767
      %v1769 = vrot.slane %v1741, %v1768
      %v1770 = vcombine.low %v1748, %v1755
      %v1771 = vcombine.low %v1762, %v1769
      %v1773 = vunpack.c.l.s4 1966171168
      %v1774 = vunpack.c.0.s8 %v1773
      %v1775 = vlaneseq
      %v1776 = vshrl.u32 %v1775, 7
      %v1777 = vsub.s32 %v1774, %v1776
      %v1778 = vrot.slane %v1770, %v1777
      %v1780 = vunpack.c.l.s4 1966171168
      %v1781 = vunpack.c.0.s8 %v1780
      %v1782 = vlaneseq
      %v1783 = vshrl.u32 %v1782, 7
      %v1784 = vsub.s32 %v1781, %v1783
      %v1785 = vrot.slane %v1771, %v1784
      %v1786 = vcombine.low %v1778, %v1785
      %v1787 = vcombine.low %v596, %v600
      %v1788 = vcombine.low %v604, %v608
      %v1789 = vcombine.low %v612, %v616
      %v1790 = vcombine.low %v620, %v624
      %v1792 = vunpack.c.l.s4 1966171168
      %v1793 = vunpack.c.0.s8 %v1792
      %v1794 = vlaneseq
      %v1795 = vshrl.u32 %v1794, 7
      %v1796 = vsub.s32 %v1793, %v1795
      %v1797 = vrot.slane %v1787, %v1796
      %v1799 = vunpack.c.l.s4 1966171168
      %v1800 = vunpack.c.0.s8 %v1799
      %v1801 = vlaneseq
      %v1802 = vshrl.u32 %v1801, 7
      %v1803 = vsub.s32 %v1800, %v1802
      %v1804 = vrot.slane %v1788, %v1803
      %v1806 = vunpack.c.l.s4 1966171168
      %v1807 = vunpack.c.0.s8 %v1806
      %v1808 = vlaneseq
      %v1809 = vshrl.u32 %v1808, 7
      %v1810 = vsub.s32 %v1807, %v1809
      %v1811 = vrot.slane %v1789, %v1810
      %v1813 = vunpack.c.l.s4 1966171168
      %v1814 = vunpack.c.0.s8 %v1813
      %v1815 = vlaneseq
      %v1816 = vshrl.u32 %v1815, 7
      %v1817 = vsub.s32 %v1814, %v1816
      %v1818 = vrot.slane %v1790, %v1817
      %v1819 = vcombine.low %v1797, %v1804
      %v1820 = vcombine.low %v1811, %v1818
      %v1822 = vunpack.c.l.s4 1966171168
      %v1823 = vunpack.c.0.s8 %v1822
      %v1824 = vlaneseq
      %v1825 = vshrl.u32 %v1824, 7
      %v1826 = vsub.s32 %v1823, %v1825
      %v1827 = vrot.slane %v1819, %v1826
      %v1829 = vunpack.c.l.s4 1966171168
      %v1830 = vunpack.c.0.s8 %v1829
      %v1831 = vlaneseq
      %v1832 = vshrl.u32 %v1831, 7
      %v1833 = vsub.s32 %v1830, %v1832
      %v1834 = vrot.slane %v1820, %v1833
      %v1835 = vcombine.low %v1827, %v1834
      %v1836 = vcombine.low %v628, %v632
      %v1837 = vcombine.low %v636, %v640
      %v1838 = vcombine.low %v644, %v648
      %v1839 = vcombine.low %v652, %v656
      %v1841 = vunpack.c.l.s4 1966171168
      %v1842 = vunpack.c.0.s8 %v1841
      %v1843 = vlaneseq
      %v1844 = vshrl.u32 %v1843, 7
      %v1845 = vsub.s32 %v1842, %v1844
      %v1846 = vrot.slane %v1836, %v1845
      %v1848 = vunpack.c.l.s4 1966171168
      %v1849 = vunpack.c.0.s8 %v1848
      %v1850 = vlaneseq
      %v1851 = vshrl.u32 %v1850, 7
      %v1852 = vsub.s32 %v1849, %v1851
      %v1853 = vrot.slane %v1837, %v1852
      %v1855 = vunpack.c.l.s4 1966171168
      %v1856 = vunpack.c.0.s8 %v1855
      %v1857 = vlaneseq
      %v1858 = vshrl.u32 %v1857, 7
      %v1859 = vsub.s32 %v1856, %v1858
      %v1860 = vrot.slane %v1838, %v1859
      %v1862 = vunpack.c.l.s4 1966171168
      %v1863 = vunpack.c.0.s8 %v1862
      %v1864 = vlaneseq
      %v1865 = vshrl.u32 %v1864, 7
      %v1866 = vsub.s32 %v1863, %v1865
      %v1867 = vrot.slane %v1839, %v1866
      %v1868 = vcombine.low %v1846, %v1853
      %v1869 = vcombine.low %v1860, %v1867
      %v1871 = vunpack.c.l.s4 1966171168
      %v1872 = vunpack.c.0.s8 %v1871
      %v1873 = vlaneseq
      %v1874 = vshrl.u32 %v1873, 7
      %v1875 = vsub.s32 %v1872, %v1874
      %v1876 = vrot.slane %v1868, %v1875
      %v1878 = vunpack.c.l.s4 1966171168
      %v1879 = vunpack.c.0.s8 %v1878
      %v1880 = vlaneseq
      %v1881 = vshrl.u32 %v1880, 7
      %v1882 = vsub.s32 %v1879, %v1881
      %v1883 = vrot.slane %v1869, %v1882
      %v1884 = vcombine.low %v1876, %v1883
      %v1885 = vcombine.low %v660, %v664
      %v1886 = vcombine.low %v668, %v672
      %v1887 = vcombine.low %v676, %v680
      %v1888 = vcombine.low %v684, %v688
      %v1890 = vunpack.c.l.s4 1966171168
      %v1891 = vunpack.c.0.s8 %v1890
      %v1892 = vlaneseq
      %v1893 = vshrl.u32 %v1892, 7
      %v1894 = vsub.s32 %v1891, %v1893
      %v1895 = vrot.slane %v1885, %v1894
      %v1897 = vunpack.c.l.s4 1966171168
      %v1898 = vunpack.c.0.s8 %v1897
      %v1899 = vlaneseq
      %v1900 = vshrl.u32 %v1899, 7
      %v1901 = vsub.s32 %v1898, %v1900
      %v1902 = vrot.slane %v1886, %v1901
      %v1904 = vunpack.c.l.s4 1966171168
      %v1905 = vunpack.c.0.s8 %v1904
      %v1906 = vlaneseq
      %v1907 = vshrl.u32 %v1906, 7
      %v1908 = vsub.s32 %v1905, %v1907
      %v1909 = vrot.slane %v1887, %v1908
      %v1911 = vunpack.c.l.s4 1966171168
      %v1912 = vunpack.c.0.s8 %v1911
      %v1913 = vlaneseq
      %v1914 = vshrl.u32 %v1913, 7
      %v1915 = vsub.s32 %v1912, %v1914
      %v1916 = vrot.slane %v1888, %v1915
      %v1917 = vcombine.low %v1895, %v1902
      %v1918 = vcombine.low %v1909, %v1916
      %v1920 = vunpack.c.l.s4 1966171168
      %v1921 = vunpack.c.0.s8 %v1920
      %v1922 = vlaneseq
      %v1923 = vshrl.u32 %v1922, 7
      %v1924 = vsub.s32 %v1921, %v1923
      %v1925 = vrot.slane %v1917, %v1924
      %v1927 = vunpack.c.l.s4 1966171168
      %v1928 = vunpack.c.0.s8 %v1927
      %v1929 = vlaneseq
      %v1930 = vshrl.u32 %v1929, 7
      %v1931 = vsub.s32 %v1928, %v1930
      %v1932 = vrot.slane %v1918, %v1931
      %v1933 = vcombine.low %v1925, %v1932
      %v1934 = vcombine.low %v692, %v696
      %v1935 = vcombine.low %v700, %v704
      %v1936 = vcombine.low %v708, %v712
      %v1937 = vcombine.low %v716, %v720
      %v1939 = vunpack.c.l.s4 1966171168
      %v1940 = vunpack.c.0.s8 %v1939
      %v1941 = vlaneseq
      %v1942 = vshrl.u32 %v1941, 7
      %v1943 = vsub.s32 %v1940, %v1942
      %v1944 = vrot.slane %v1934, %v1943
      %v1946 = vunpack.c.l.s4 1966171168
      %v1947 = vunpack.c.0.s8 %v1946
      %v1948 = vlaneseq
      %v1949 = vshrl.u32 %v1948, 7
      %v1950 = vsub.s32 %v1947, %v1949
      %v1951 = vrot.slane %v1935, %v1950
      %v1953 = vunpack.c.l.s4 1966171168
      %v1954 = vunpack.c.0.s8 %v1953
      %v1955 = vlaneseq
      %v1956 = vshrl.u32 %v1955, 7
      %v1957 = vsub.s32 %v1954, %v1956
      %v1958 = vrot.slane %v1936, %v1957
      %v1960 = vunpack.c.l.s4 1966171168
      %v1961 = vunpack.c.0.s8 %v1960
      %v1962 = vlaneseq
      %v1963 = vshrl.u32 %v1962, 7
      %v1964 = vsub.s32 %v1961, %v1963
      %v1965 = vrot.slane %v1937, %v1964
      %v1966 = vcombine.low %v1944, %v1951
      %v1967 = vcombine.low %v1958, %v1965
      %v1969 = vunpack.c.l.s4 1966171168
      %v1970 = vunpack.c.0.s8 %v1969
      %v1971 = vlaneseq
      %v1972 = vshrl.u32 %v1971, 7
      %v1973 = vsub.s32 %v1970, %v1972
      %v1974 = vrot.slane %v1966, %v1973
      %v1976 = vunpack.c.l.s4 1966171168
      %v1977 = vunpack.c.0.s8 %v1976
      %v1978 = vlaneseq
      %v1979 = vshrl.u32 %v1978, 7
      %v1980 = vsub.s32 %v1977, %v1979
      %v1981 = vrot.slane %v1967, %v1980
      %v1982 = vcombine.low %v1974, %v1981
      %v1983 = vcombine.low %v724, %v728
      %v1984 = vcombine.low %v732, %v736
      %v1985 = vcombine.low %v740, %v744
      %v1986 = vcombine.low %v748, %v752
      %v1988 = vunpack.c.l.s4 1966171168
      %v1989 = vunpack.c.0.s8 %v1988
      %v1990 = vlaneseq
      %v1991 = vshrl.u32 %v1990, 7
      %v1992 = vsub.s32 %v1989, %v1991
      %v1993 = vrot.slane %v1983, %v1992
      %v1995 = vunpack.c.l.s4 1966171168
      %v1996 = vunpack.c.0.s8 %v1995
      %v1997 = vlaneseq
      %v1998 = vshrl.u32 %v1997, 7
      %v1999 = vsub.s32 %v1996, %v1998
      %v2000 = vrot.slane %v1984, %v1999
      %v2002 = vunpack.c.l.s4 1966171168
      %v2003 = vunpack.c.0.s8 %v2002
      %v2004 = vlaneseq
      %v2005 = vshrl.u32 %v2004, 7
      %v2006 = vsub.s32 %v2003, %v2005
      %v2007 = vrot.slane %v1985, %v2006
      %v2009 = vunpack.c.l.s4 1966171168
      %v2010 = vunpack.c.0.s8 %v2009
      %v2011 = vlaneseq
      %v2012 = vshrl.u32 %v2011, 7
      %v2013 = vsub.s32 %v2010, %v2012
      %v2014 = vrot.slane %v1986, %v2013
      %v2015 = vcombine.low %v1993, %v2000
      %v2016 = vcombine.low %v2007, %v2014
      %v2018 = vunpack.c.l.s4 1966171168
      %v2019 = vunpack.c.0.s8 %v2018
      %v2020 = vlaneseq
      %v2021 = vshrl.u32 %v2020, 7
      %v2022 = vsub.s32 %v2019, %v2021
      %v2023 = vrot.slane %v2015, %v2022
      %v2025 = vunpack.c.l.s4 1966171168
      %v2026 = vunpack.c.0.s8 %v2025
      %v2027 = vlaneseq
      %v2028 = vshrl.u32 %v2027, 7
      %v2029 = vsub.s32 %v2026, %v2028
      %v2030 = vrot.slane %v2016, %v2029
      %v2031 = vcombine.low %v2023, %v2030
      %v2032 = vcombine.low %v756, %v760
      %v2033 = vcombine.low %v764, %v768
      %v2034 = vcombine.low %v772, %v776
      %v2035 = vcombine.low %v780, %v784
      %v2037 = vunpack.c.l.s4 1966171168
      %v2038 = vunpack.c.0.s8 %v2037
      %v2039 = vlaneseq
      %v2040 = vshrl.u32 %v2039, 7
      %v2041 = vsub.s32 %v2038, %v2040
      %v2042 = vrot.slane %v2032, %v2041
      %v2044 = vunpack.c.l.s4 1966171168
      %v2045 = vunpack.c.0.s8 %v2044
      %v2046 = vlaneseq
      %v2047 = vshrl.u32 %v2046, 7
      %v2048 = vsub.s32 %v2045, %v2047
      %v2049 = vrot.slane %v2033, %v2048
      %v2051 = vunpack.c.l.s4 1966171168
      %v2052 = vunpack.c.0.s8 %v2051
      %v2053 = vlaneseq
      %v2054 = vshrl.u32 %v2053, 7
      %v2055 = vsub.s32 %v2052, %v2054
      %v2056 = vrot.slane %v2034, %v2055
      %v2058 = vunpack.c.l.s4 1966171168
      %v2059 = vunpack.c.0.s8 %v2058
      %v2060 = vlaneseq
      %v2061 = vshrl.u32 %v2060, 7
      %v2062 = vsub.s32 %v2059, %v2061
      %v2063 = vrot.slane %v2035, %v2062
      %v2064 = vcombine.low %v2042, %v2049
      %v2065 = vcombine.low %v2056, %v2063
      %v2067 = vunpack.c.l.s4 1966171168
      %v2068 = vunpack.c.0.s8 %v2067
      %v2069 = vlaneseq
      %v2070 = vshrl.u32 %v2069, 7
      %v2071 = vsub.s32 %v2068, %v2070
      %v2072 = vrot.slane %v2064, %v2071
      %v2074 = vunpack.c.l.s4 1966171168
      %v2075 = vunpack.c.0.s8 %v2074
      %v2076 = vlaneseq
      %v2077 = vshrl.u32 %v2076, 7
      %v2078 = vsub.s32 %v2075, %v2077
      %v2079 = vrot.slane %v2065, %v2078
      %v2080 = vcombine.low %v2072, %v2079
      %v2081 = vcombine.low %v788, %v792
      %v2082 = vcombine.low %v796, %v800
      %v2083 = vcombine.low %v804, %v808
      %v2084 = vcombine.low %v812, %v816
      %v2086 = vunpack.c.l.s4 1966171168
      %v2087 = vunpack.c.0.s8 %v2086
      %v2088 = vlaneseq
      %v2089 = vshrl.u32 %v2088, 7
      %v2090 = vsub.s32 %v2087, %v2089
      %v2091 = vrot.slane %v2081, %v2090
      %v2093 = vunpack.c.l.s4 1966171168
      %v2094 = vunpack.c.0.s8 %v2093
      %v2095 = vlaneseq
      %v2096 = vshrl.u32 %v2095, 7
      %v2097 = vsub.s32 %v2094, %v2096
      %v2098 = vrot.slane %v2082, %v2097
      %v2100 = vunpack.c.l.s4 1966171168
      %v2101 = vunpack.c.0.s8 %v2100
      %v2102 = vlaneseq
      %v2103 = vshrl.u32 %v2102, 7
      %v2104 = vsub.s32 %v2101, %v2103
      %v2105 = vrot.slane %v2083, %v2104
      %v2107 = vunpack.c.l.s4 1966171168
      %v2108 = vunpack.c.0.s8 %v2107
      %v2109 = vlaneseq
      %v2110 = vshrl.u32 %v2109, 7
      %v2111 = vsub.s32 %v2108, %v2110
      %v2112 = vrot.slane %v2084, %v2111
      %v2113 = vcombine.low %v2091, %v2098
      %v2114 = vcombine.low %v2105, %v2112
      %v2116 = vunpack.c.l.s4 1966171168
      %v2117 = vunpack.c.0.s8 %v2116
      %v2118 = vlaneseq
      %v2119 = vshrl.u32 %v2118, 7
      %v2120 = vsub.s32 %v2117, %v2119
      %v2121 = vrot.slane %v2113, %v2120
      %v2123 = vunpack.c.l.s4 1966171168
      %v2124 = vunpack.c.0.s8 %v2123
      %v2125 = vlaneseq
      %v2126 = vshrl.u32 %v2125, 7
      %v2127 = vsub.s32 %v2124, %v2126
      %v2128 = vrot.slane %v2114, %v2127
      %v2129 = vcombine.low %v2121, %v2128
      %v2130 = vcombine.low %v820, %v824
      %v2131 = vcombine.low %v828, %v832
      %v2132 = vcombine.low %v836, %v840
      %v2133 = vcombine.low %v844, %v848
      %v2135 = vunpack.c.l.s4 1966171168
      %v2136 = vunpack.c.0.s8 %v2135
      %v2137 = vlaneseq
      %v2138 = vshrl.u32 %v2137, 7
      %v2139 = vsub.s32 %v2136, %v2138
      %v2140 = vrot.slane %v2130, %v2139
      %v2142 = vunpack.c.l.s4 1966171168
      %v2143 = vunpack.c.0.s8 %v2142
      %v2144 = vlaneseq
      %v2145 = vshrl.u32 %v2144, 7
      %v2146 = vsub.s32 %v2143, %v2145
      %v2147 = vrot.slane %v2131, %v2146
      %v2149 = vunpack.c.l.s4 1966171168
      %v2150 = vunpack.c.0.s8 %v2149
      %v2151 = vlaneseq
      %v2152 = vshrl.u32 %v2151, 7
      %v2153 = vsub.s32 %v2150, %v2152
      %v2154 = vrot.slane %v2132, %v2153
      %v2156 = vunpack.c.l.s4 1966171168
      %v2157 = vunpack.c.0.s8 %v2156
      %v2158 = vlaneseq
      %v2159 = vshrl.u32 %v2158, 7
      %v2160 = vsub.s32 %v2157, %v2159
      %v2161 = vrot.slane %v2133, %v2160
      %v2162 = vcombine.low %v2140, %v2147
      %v2163 = vcombine.low %v2154, %v2161
      %v2165 = vunpack.c.l.s4 1966171168
      %v2166 = vunpack.c.0.s8 %v2165
      %v2167 = vlaneseq
      %v2168 = vshrl.u32 %v2167, 7
      %v2169 = vsub.s32 %v2166, %v2168
      %v2170 = vrot.slane %v2162, %v2169
      %v2172 = vunpack.c.l.s4 1966171168
      %v2173 = vunpack.c.0.s8 %v2172
      %v2174 = vlaneseq
      %v2175 = vshrl.u32 %v2174, 7
      %v2176 = vsub.s32 %v2173, %v2175
      %v2177 = vrot.slane %v2163, %v2176
      %v2178 = vcombine.low %v2170, %v2177
      %v2179 = vcombine.low %v852, %v856
      %v2180 = vcombine.low %v860, %v864
      %v2181 = vcombine.low %v868, %v872
      %v2182 = vcombine.low %v876, %v880
      %v2184 = vunpack.c.l.s4 1966171168
      %v2185 = vunpack.c.0.s8 %v2184
      %v2186 = vlaneseq
      %v2187 = vshrl.u32 %v2186, 7
      %v2188 = vsub.s32 %v2185, %v2187
      %v2189 = vrot.slane %v2179, %v2188
      %v2191 = vunpack.c.l.s4 1966171168
      %v2192 = vunpack.c.0.s8 %v2191
      %v2193 = vlaneseq
      %v2194 = vshrl.u32 %v2193, 7
      %v2195 = vsub.s32 %v2192, %v2194
      %v2196 = vrot.slane %v2180, %v2195
      %v2198 = vunpack.c.l.s4 1966171168
      %v2199 = vunpack.c.0.s8 %v2198
      %v2200 = vlaneseq
      %v2201 = vshrl.u32 %v2200, 7
      %v2202 = vsub.s32 %v2199, %v2201
      %v2203 = vrot.slane %v2181, %v2202
      %v2205 = vunpack.c.l.s4 1966171168
      %v2206 = vunpack.c.0.s8 %v2205
      %v2207 = vlaneseq
      %v2208 = vshrl.u32 %v2207, 7
      %v2209 = vsub.s32 %v2206, %v2208
      %v2210 = vrot.slane %v2182, %v2209
      %v2211 = vcombine.low %v2189, %v2196
      %v2212 = vcombine.low %v2203, %v2210
      %v2214 = vunpack.c.l.s4 1966171168
      %v2215 = vunpack.c.0.s8 %v2214
      %v2216 = vlaneseq
      %v2217 = vshrl.u32 %v2216, 7
      %v2218 = vsub.s32 %v2215, %v2217
      %v2219 = vrot.slane %v2211, %v2218
      %v2221 = vunpack.c.l.s4 1966171168
      %v2222 = vunpack.c.0.s8 %v2221
      %v2223 = vlaneseq
      %v2224 = vshrl.u32 %v2223, 7
      %v2225 = vsub.s32 %v2222, %v2224
      %v2226 = vrot.slane %v2212, %v2225
      %v2227 = vcombine.low %v2219, %v2226
      %v2228 = vcombine.low %v884, %v888
      %v2229 = vcombine.low %v892, %v896
      %v2230 = vcombine.low %v900, %v904
      %v2231 = vcombine.low %v908, %v912
      %v2233 = vunpack.c.l.s4 1966171168
      %v2234 = vunpack.c.0.s8 %v2233
      %v2235 = vlaneseq
      %v2236 = vshrl.u32 %v2235, 7
      %v2237 = vsub.s32 %v2234, %v2236
      %v2238 = vrot.slane %v2228, %v2237
      %v2240 = vunpack.c.l.s4 1966171168
      %v2241 = vunpack.c.0.s8 %v2240
      %v2242 = vlaneseq
      %v2243 = vshrl.u32 %v2242, 7
      %v2244 = vsub.s32 %v2241, %v2243
      %v2245 = vrot.slane %v2229, %v2244
      %v2247 = vunpack.c.l.s4 1966171168
      %v2248 = vunpack.c.0.s8 %v2247
      %v2249 = vlaneseq
      %v2250 = vshrl.u32 %v2249, 7
      %v2251 = vsub.s32 %v2248, %v2250
      %v2252 = vrot.slane %v2230, %v2251
      %v2254 = vunpack.c.l.s4 1966171168
      %v2255 = vunpack.c.0.s8 %v2254
      %v2256 = vlaneseq
      %v2257 = vshrl.u32 %v2256, 7
      %v2258 = vsub.s32 %v2255, %v2257
      %v2259 = vrot.slane %v2231, %v2258
      %v2260 = vcombine.low %v2238, %v2245
      %v2261 = vcombine.low %v2252, %v2259
      %v2263 = vunpack.c.l.s4 1966171168
      %v2264 = vunpack.c.0.s8 %v2263
      %v2265 = vlaneseq
      %v2266 = vshrl.u32 %v2265, 7
      %v2267 = vsub.s32 %v2264, %v2266
      %v2268 = vrot.slane %v2260, %v2267
      %v2270 = vunpack.c.l.s4 1966171168
      %v2271 = vunpack.c.0.s8 %v2270
      %v2272 = vlaneseq
      %v2273 = vshrl.u32 %v2272, 7
      %v2274 = vsub.s32 %v2271, %v2273
      %v2275 = vrot.slane %v2261, %v2274
      %v2276 = vcombine.low %v2268, %v2275
      %v2277 = vcombine.low %v916, %v920
      %v2278 = vcombine.low %v924, %v928
      %v2279 = vcombine.low %v932, %v936
      %v2280 = vcombine.low %v940, %v944
      %v2282 = vunpack.c.l.s4 1966171168
      %v2283 = vunpack.c.0.s8 %v2282
      %v2284 = vlaneseq
      %v2285 = vshrl.u32 %v2284, 7
      %v2286 = vsub.s32 %v2283, %v2285
      %v2287 = vrot.slane %v2277, %v2286
      %v2289 = vunpack.c.l.s4 1966171168
      %v2290 = vunpack.c.0.s8 %v2289
      %v2291 = vlaneseq
      %v2292 = vshrl.u32 %v2291, 7
      %v2293 = vsub.s32 %v2290, %v2292
      %v2294 = vrot.slane %v2278, %v2293
      %v2296 = vunpack.c.l.s4 1966171168
      %v2297 = vunpack.c.0.s8 %v2296
      %v2298 = vlaneseq
      %v2299 = vshrl.u32 %v2298, 7
      %v2300 = vsub.s32 %v2297, %v2299
      %v2301 = vrot.slane %v2279, %v2300
      %v2303 = vunpack.c.l.s4 1966171168
      %v2304 = vunpack.c.0.s8 %v2303
      %v2305 = vlaneseq
      %v2306 = vshrl.u32 %v2305, 7
      %v2307 = vsub.s32 %v2304, %v2306
      %v2308 = vrot.slane %v2280, %v2307
      %v2309 = vcombine.low %v2287, %v2294
      %v2310 = vcombine.low %v2301, %v2308
      %v2312 = vunpack.c.l.s4 1966171168
      %v2313 = vunpack.c.0.s8 %v2312
      %v2314 = vlaneseq
      %v2315 = vshrl.u32 %v2314, 7
      %v2316 = vsub.s32 %v2313, %v2315
      %v2317 = vrot.slane %v2309, %v2316
      %v2319 = vunpack.c.l.s4 1966171168
      %v2320 = vunpack.c.0.s8 %v2319
      %v2321 = vlaneseq
      %v2322 = vshrl.u32 %v2321, 7
      %v2323 = vsub.s32 %v2320, %v2322
      %v2324 = vrot.slane %v2310, %v2323
      %v2325 = vcombine.low %v2317, %v2324
      %v2326 = vcombine.low %v948, %v952
      %v2327 = vcombine.low %v956, %v960
      %v2328 = vcombine.low %v964, %v968
      %v2329 = vcombine.low %v972, %v976
      %v2331 = vunpack.c.l.s4 1966171168
      %v2332 = vunpack.c.0.s8 %v2331
      %v2333 = vlaneseq
      %v2334 = vshrl.u32 %v2333, 7
      %v2335 = vsub.s32 %v2332, %v2334
      %v2336 = vrot.slane %v2326, %v2335
      %v2338 = vunpack.c.l.s4 1966171168
      %v2339 = vunpack.c.0.s8 %v2338
      %v2340 = vlaneseq
      %v2341 = vshrl.u32 %v2340, 7
      %v2342 = vsub.s32 %v2339, %v2341
      %v2343 = vrot.slane %v2327, %v2342
      %v2345 = vunpack.c.l.s4 1966171168
      %v2346 = vunpack.c.0.s8 %v2345
      %v2347 = vlaneseq
      %v2348 = vshrl.u32 %v2347, 7
      %v2349 = vsub.s32 %v2346, %v2348
      %v2350 = vrot.slane %v2328, %v2349
      %v2352 = vunpack.c.l.s4 1966171168
      %v2353 = vunpack.c.0.s8 %v2352
      %v2354 = vlaneseq
      %v2355 = vshrl.u32 %v2354, 7
      %v2356 = vsub.s32 %v2353, %v2355
      %v2357 = vrot.slane %v2329, %v2356
      %v2358 = vcombine.low %v2336, %v2343
      %v2359 = vcombine.low %v2350, %v2357
      %v2361 = vunpack.c.l.s4 1966171168
      %v2362 = vunpack.c.0.s8 %v2361
      %v2363 = vlaneseq
      %v2364 = vshrl.u32 %v2363, 7
      %v2365 = vsub.s32 %v2362, %v2364
      %v2366 = vrot.slane %v2358, %v2365
      %v2368 = vunpack.c.l.s4 1966171168
      %v2369 = vunpack.c.0.s8 %v2368
      %v2370 = vlaneseq
      %v2371 = vshrl.u32 %v2370, 7
      %v2372 = vsub.s32 %v2369, %v2371
      %v2373 = vrot.slane %v2359, %v2372
      %v2374 = vcombine.low %v2366, %v2373
      %v2375 = vcombine.low %v980, %v984
      %v2376 = vcombine.low %v988, %v992
      %v2377 = vcombine.low %v996, %v1000
      %v2378 = vcombine.low %v1004, %v1008
      %v2380 = vunpack.c.l.s4 1966171168
      %v2381 = vunpack.c.0.s8 %v2380
      %v2382 = vlaneseq
      %v2383 = vshrl.u32 %v2382, 7
      %v2384 = vsub.s32 %v2381, %v2383
      %v2385 = vrot.slane %v2375, %v2384
      %v2387 = vunpack.c.l.s4 1966171168
      %v2388 = vunpack.c.0.s8 %v2387
      %v2389 = vlaneseq
      %v2390 = vshrl.u32 %v2389, 7
      %v2391 = vsub.s32 %v2388, %v2390
      %v2392 = vrot.slane %v2376, %v2391
      %v2394 = vunpack.c.l.s4 1966171168
      %v2395 = vunpack.c.0.s8 %v2394
      %v2396 = vlaneseq
      %v2397 = vshrl.u32 %v2396, 7
      %v2398 = vsub.s32 %v2395, %v2397
      %v2399 = vrot.slane %v2377, %v2398
      %v2401 = vunpack.c.l.s4 1966171168
      %v2402 = vunpack.c.0.s8 %v2401
      %v2403 = vlaneseq
      %v2404 = vshrl.u32 %v2403, 7
      %v2405 = vsub.s32 %v2402, %v2404
      %v2406 = vrot.slane %v2378, %v2405
      %v2407 = vcombine.low %v2385, %v2392
      %v2408 = vcombine.low %v2399, %v2406
      %v2410 = vunpack.c.l.s4 1966171168
      %v2411 = vunpack.c.0.s8 %v2410
      %v2412 = vlaneseq
      %v2413 = vshrl.u32 %v2412, 7
      %v2414 = vsub.s32 %v2411, %v2413
      %v2415 = vrot.slane %v2407, %v2414
      %v2417 = vunpack.c.l.s4 1966171168
      %v2418 = vunpack.c.0.s8 %v2417
      %v2419 = vlaneseq
      %v2420 = vshrl.u32 %v2419, 7
      %v2421 = vsub.s32 %v2418, %v2420
      %v2422 = vrot.slane %v2408, %v2421
      %v2423 = vcombine.low %v2415, %v2422
      %v2424 = vcombine.low %v1012, %v1016
      %v2425 = vcombine.low %v1020, %v1024
      %v2426 = vcombine.low %v1028, %v1032
      %v2427 = vcombine.low %v1036, %v1040
      %v2429 = vunpack.c.l.s4 1966171168
      %v2430 = vunpack.c.0.s8 %v2429
      %v2431 = vlaneseq
      %v2432 = vshrl.u32 %v2431, 7
      %v2433 = vsub.s32 %v2430, %v2432
      %v2434 = vrot.slane %v2424, %v2433
      %v2436 = vunpack.c.l.s4 1966171168
      %v2437 = vunpack.c.0.s8 %v2436
      %v2438 = vlaneseq
      %v2439 = vshrl.u32 %v2438, 7
      %v2440 = vsub.s32 %v2437, %v2439
      %v2441 = vrot.slane %v2425, %v2440
      %v2443 = vunpack.c.l.s4 1966171168
      %v2444 = vunpack.c.0.s8 %v2443
      %v2445 = vlaneseq
      %v2446 = vshrl.u32 %v2445, 7
      %v2447 = vsub.s32 %v2444, %v2446
      %v2448 = vrot.slane %v2426, %v2447
      %v2450 = vunpack.c.l.s4 1966171168
      %v2451 = vunpack.c.0.s8 %v2450
      %v2452 = vlaneseq
      %v2453 = vshrl.u32 %v2452, 7
      %v2454 = vsub.s32 %v2451, %v2453
      %v2455 = vrot.slane %v2427, %v2454
      %v2456 = vcombine.low %v2434, %v2441
      %v2457 = vcombine.low %v2448, %v2455
      %v2459 = vunpack.c.l.s4 1966171168
      %v2460 = vunpack.c.0.s8 %v2459
      %v2461 = vlaneseq
      %v2462 = vshrl.u32 %v2461, 7
      %v2463 = vsub.s32 %v2460, %v2462
      %v2464 = vrot.slane %v2456, %v2463
      %v2466 = vunpack.c.l.s4 1966171168
      %v2467 = vunpack.c.0.s8 %v2466
      %v2468 = vlaneseq
      %v2469 = vshrl.u32 %v2468, 7
      %v2470 = vsub.s32 %v2467, %v2469
      %v2471 = vrot.slane %v2457, %v2470
      %v2472 = vcombine.low %v2464, %v2471
      %v2473 = vcombine.low %v1044, %v1048
      %v2474 = vcombine.low %v1052, %v1056
      %v2475 = vcombine.low %v1060, %v1064
      %v2476 = vcombine.low %v1068, %v1072
      %v2478 = vunpack.c.l.s4 1966171168
      %v2479 = vunpack.c.0.s8 %v2478
      %v2480 = vlaneseq
      %v2481 = vshrl.u32 %v2480, 7
      %v2482 = vsub.s32 %v2479, %v2481
      %v2483 = vrot.slane %v2473, %v2482
      %v2485 = vunpack.c.l.s4 1966171168
      %v2486 = vunpack.c.0.s8 %v2485
      %v2487 = vlaneseq
      %v2488 = vshrl.u32 %v2487, 7
      %v2489 = vsub.s32 %v2486, %v2488
      %v2490 = vrot.slane %v2474, %v2489
      %v2492 = vunpack.c.l.s4 1966171168
      %v2493 = vunpack.c.0.s8 %v2492
      %v2494 = vlaneseq
      %v2495 = vshrl.u32 %v2494, 7
      %v2496 = vsub.s32 %v2493, %v2495
      %v2497 = vrot.slane %v2475, %v2496
      %v2499 = vunpack.c.l.s4 1966171168
      %v2500 = vunpack.c.0.s8 %v2499
      %v2501 = vlaneseq
      %v2502 = vshrl.u32 %v2501, 7
      %v2503 = vsub.s32 %v2500, %v2502
      %v2504 = vrot.slane %v2476, %v2503
      %v2505 = vcombine.low %v2483, %v2490
      %v2506 = vcombine.low %v2497, %v2504
      %v2508 = vunpack.c.l.s4 1966171168
      %v2509 = vunpack.c.0.s8 %v2508
      %v2510 = vlaneseq
      %v2511 = vshrl.u32 %v2510, 7
      %v2512 = vsub.s32 %v2509, %v2511
      %v2513 = vrot.slane %v2505, %v2512
      %v2515 = vunpack.c.l.s4 1966171168
      %v2516 = vunpack.c.0.s8 %v2515
      %v2517 = vlaneseq
      %v2518 = vshrl.u32 %v2517, 7
      %v2519 = vsub.s32 %v2516, %v2518
      %v2520 = vrot.slane %v2506, %v2519
      %v2521 = vcombine.low %v2513, %v2520
      %v2522 = vcombine.low %v1076, %v1080
      %v2523 = vcombine.low %v1084, %v1088
      %v2524 = vcombine.low %v1092, %v1096
      %v2525 = vcombine.low %v1100, %v1104
      %v2527 = vunpack.c.l.s4 1966171168
      %v2528 = vunpack.c.0.s8 %v2527
      %v2529 = vlaneseq
      %v2530 = vshrl.u32 %v2529, 7
      %v2531 = vsub.s32 %v2528, %v2530
      %v2532 = vrot.slane %v2522, %v2531
      %v2534 = vunpack.c.l.s4 1966171168
      %v2535 = vunpack.c.0.s8 %v2534
      %v2536 = vlaneseq
      %v2537 = vshrl.u32 %v2536, 7
      %v2538 = vsub.s32 %v2535, %v2537
      %v2539 = vrot.slane %v2523, %v2538
      %v2541 = vunpack.c.l.s4 1966171168
      %v2542 = vunpack.c.0.s8 %v2541
      %v2543 = vlaneseq
      %v2544 = vshrl.u32 %v2543, 7
      %v2545 = vsub.s32 %v2542, %v2544
      %v2546 = vrot.slane %v2524, %v2545
      %v2548 = vunpack.c.l.s4 1966171168
      %v2549 = vunpack.c.0.s8 %v2548
      %v2550 = vlaneseq
      %v2551 = vshrl.u32 %v2550, 7
      %v2552 = vsub.s32 %v2549, %v2551
      %v2553 = vrot.slane %v2525, %v2552
      %v2554 = vcombine.low %v2532, %v2539
      %v2555 = vcombine.low %v2546, %v2553
      %v2557 = vunpack.c.l.s4 1966171168
      %v2558 = vunpack.c.0.s8 %v2557
      %v2559 = vlaneseq
      %v2560 = vshrl.u32 %v2559, 7
      %v2561 = vsub.s32 %v2558, %v2560
      %v2562 = vrot.slane %v2554, %v2561
      %v2564 = vunpack.c.l.s4 1966171168
      %v2565 = vunpack.c.0.s8 %v2564
      %v2566 = vlaneseq
      %v2567 = vshrl.u32 %v2566, 7
      %v2568 = vsub.s32 %v2565, %v2567
      %v2569 = vrot.slane %v2555, %v2568
      %v2570 = vcombine.low %v2562, %v2569
      %v2571 = vcombine.low %v1108, %v1112
      %v2572 = vcombine.low %v1116, %v1120
      %v2573 = vcombine.low %v1124, %v1128
      %v2574 = vcombine.low %v1132, %v1136
      %v2576 = vunpack.c.l.s4 1966171168
      %v2577 = vunpack.c.0.s8 %v2576
      %v2578 = vlaneseq
      %v2579 = vshrl.u32 %v2578, 7
      %v2580 = vsub.s32 %v2577, %v2579
      %v2581 = vrot.slane %v2571, %v2580
      %v2583 = vunpack.c.l.s4 1966171168
      %v2584 = vunpack.c.0.s8 %v2583
      %v2585 = vlaneseq
      %v2586 = vshrl.u32 %v2585, 7
      %v2587 = vsub.s32 %v2584, %v2586
      %v2588 = vrot.slane %v2572, %v2587
      %v2590 = vunpack.c.l.s4 1966171168
      %v2591 = vunpack.c.0.s8 %v2590
      %v2592 = vlaneseq
      %v2593 = vshrl.u32 %v2592, 7
      %v2594 = vsub.s32 %v2591, %v2593
      %v2595 = vrot.slane %v2573, %v2594
      %v2597 = vunpack.c.l.s4 1966171168
      %v2598 = vunpack.c.0.s8 %v2597
      %v2599 = vlaneseq
      %v2600 = vshrl.u32 %v2599, 7
      %v2601 = vsub.s32 %v2598, %v2600
      %v2602 = vrot.slane %v2574, %v2601
      %v2603 = vcombine.low %v2581, %v2588
      %v2604 = vcombine.low %v2595, %v2602
      %v2606 = vunpack.c.l.s4 1966171168
      %v2607 = vunpack.c.0.s8 %v2606
      %v2608 = vlaneseq
      %v2609 = vshrl.u32 %v2608, 7
      %v2610 = vsub.s32 %v2607, %v2609
      %v2611 = vrot.slane %v2603, %v2610
      %v2613 = vunpack.c.l.s4 1966171168
      %v2614 = vunpack.c.0.s8 %v2613
      %v2615 = vlaneseq
      %v2616 = vshrl.u32 %v2615, 7
      %v2617 = vsub.s32 %v2614, %v2616
      %v2618 = vrot.slane %v2604, %v2617
      %v2619 = vcombine.low %v2611, %v2618
      %v2620 = vcombine.low %v1140, %v1144
      %v2621 = vcombine.low %v1148, %v1152
      %v2622 = vcombine.low %v1156, %v1160
      %v2623 = vcombine.low %v1164, %v1168
      %v2625 = vunpack.c.l.s4 1966171168
      %v2626 = vunpack.c.0.s8 %v2625
      %v2627 = vlaneseq
      %v2628 = vshrl.u32 %v2627, 7
      %v2629 = vsub.s32 %v2626, %v2628
      %v2630 = vrot.slane %v2620, %v2629
      %v2632 = vunpack.c.l.s4 1966171168
      %v2633 = vunpack.c.0.s8 %v2632
      %v2634 = vlaneseq
      %v2635 = vshrl.u32 %v2634, 7
      %v2636 = vsub.s32 %v2633, %v2635
      %v2637 = vrot.slane %v2621, %v2636
      %v2639 = vunpack.c.l.s4 1966171168
      %v2640 = vunpack.c.0.s8 %v2639
      %v2641 = vlaneseq
      %v2642 = vshrl.u32 %v2641, 7
      %v2643 = vsub.s32 %v2640, %v2642
      %v2644 = vrot.slane %v2622, %v2643
      %v2646 = vunpack.c.l.s4 1966171168
      %v2647 = vunpack.c.0.s8 %v2646
      %v2648 = vlaneseq
      %v2649 = vshrl.u32 %v2648, 7
      %v2650 = vsub.s32 %v2647, %v2649
      %v2651 = vrot.slane %v2623, %v2650
      %v2652 = vcombine.low %v2630, %v2637
      %v2653 = vcombine.low %v2644, %v2651
      %v2655 = vunpack.c.l.s4 1966171168
      %v2656 = vunpack.c.0.s8 %v2655
      %v2657 = vlaneseq
      %v2658 = vshrl.u32 %v2657, 7
      %v2659 = vsub.s32 %v2656, %v2658
      %v2660 = vrot.slane %v2652, %v2659
      %v2662 = vunpack.c.l.s4 1966171168
      %v2663 = vunpack.c.0.s8 %v2662
      %v2664 = vlaneseq
      %v2665 = vshrl.u32 %v2664, 7
      %v2666 = vsub.s32 %v2663, %v2665
      %v2667 = vrot.slane %v2653, %v2666
      %v2668 = vcombine.low %v2660, %v2667
      %v2669 = vcombine.low %v1172, %v1176
      %v2670 = vcombine.low %v1180, %v1184
      %v2671 = vcombine.low %v1188, %v1192
      %v2672 = vcombine.low %v1196, %v1200
      %v2674 = vunpack.c.l.s4 1966171168
      %v2675 = vunpack.c.0.s8 %v2674
      %v2676 = vlaneseq
      %v2677 = vshrl.u32 %v2676, 7
      %v2678 = vsub.s32 %v2675, %v2677
      %v2679 = vrot.slane %v2669, %v2678
      %v2681 = vunpack.c.l.s4 1966171168
      %v2682 = vunpack.c.0.s8 %v2681
      %v2683 = vlaneseq
      %v2684 = vshrl.u32 %v2683, 7
      %v2685 = vsub.s32 %v2682, %v2684
      %v2686 = vrot.slane %v2670, %v2685
      %v2688 = vunpack.c.l.s4 1966171168
      %v2689 = vunpack.c.0.s8 %v2688
      %v2690 = vlaneseq
      %v2691 = vshrl.u32 %v2690, 7
      %v2692 = vsub.s32 %v2689, %v2691
      %v2693 = vrot.slane %v2671, %v2692
      %v2695 = vunpack.c.l.s4 1966171168
      %v2696 = vunpack.c.0.s8 %v2695
      %v2697 = vlaneseq
      %v2698 = vshrl.u32 %v2697, 7
      %v2699 = vsub.s32 %v2696, %v2698
      %v2700 = vrot.slane %v2672, %v2699
      %v2701 = vcombine.low %v2679, %v2686
      %v2702 = vcombine.low %v2693, %v2700
      %v2704 = vunpack.c.l.s4 1966171168
      %v2705 = vunpack.c.0.s8 %v2704
      %v2706 = vlaneseq
      %v2707 = vshrl.u32 %v2706, 7
      %v2708 = vsub.s32 %v2705, %v2707
      %v2709 = vrot.slane %v2701, %v2708
      %v2711 = vunpack.c.l.s4 1966171168
      %v2712 = vunpack.c.0.s8 %v2711
      %v2713 = vlaneseq
      %v2714 = vshrl.u32 %v2713, 7
      %v2715 = vsub.s32 %v2712, %v2714
      %v2716 = vrot.slane %v2702, %v2715
      %v2717 = vcombine.low %v2709, %v2716
      %v2718 = vcombine.low %v1204, %v1208
      %v2719 = vcombine.low %v1212, %v1216
      %v2720 = vcombine.low %v1220, %v1224
      %v2721 = vcombine.low %v1228, %v1232
      %v2723 = vunpack.c.l.s4 1966171168
      %v2724 = vunpack.c.0.s8 %v2723
      %v2725 = vlaneseq
      %v2726 = vshrl.u32 %v2725, 7
      %v2727 = vsub.s32 %v2724, %v2726
      %v2728 = vrot.slane %v2718, %v2727
      %v2730 = vunpack.c.l.s4 1966171168
      %v2731 = vunpack.c.0.s8 %v2730
      %v2732 = vlaneseq
      %v2733 = vshrl.u32 %v2732, 7
      %v2734 = vsub.s32 %v2731, %v2733
      %v2735 = vrot.slane %v2719, %v2734
      %v2737 = vunpack.c.l.s4 1966171168
      %v2738 = vunpack.c.0.s8 %v2737
      %v2739 = vlaneseq
      %v2740 = vshrl.u32 %v2739, 7
      %v2741 = vsub.s32 %v2738, %v2740
      %v2742 = vrot.slane %v2720, %v2741
      %v2744 = vunpack.c.l.s4 1966171168
      %v2745 = vunpack.c.0.s8 %v2744
      %v2746 = vlaneseq
      %v2747 = vshrl.u32 %v2746, 7
      %v2748 = vsub.s32 %v2745, %v2747
      %v2749 = vrot.slane %v2721, %v2748
      %v2750 = vcombine.low %v2728, %v2735
      %v2751 = vcombine.low %v2742, %v2749
      %v2753 = vunpack.c.l.s4 1966171168
      %v2754 = vunpack.c.0.s8 %v2753
      %v2755 = vlaneseq
      %v2756 = vshrl.u32 %v2755, 7
      %v2757 = vsub.s32 %v2754, %v2756
      %v2758 = vrot.slane %v2750, %v2757
      %v2760 = vunpack.c.l.s4 1966171168
      %v2761 = vunpack.c.0.s8 %v2760
      %v2762 = vlaneseq
      %v2763 = vshrl.u32 %v2762, 7
      %v2764 = vsub.s32 %v2761, %v2763
      %v2765 = vrot.slane %v2751, %v2764
      %v2766 = vcombine.low %v2758, %v2765
      %v2767 = vcombine.low %v1236, %v1240
      %v2768 = vcombine.low %v1244, %v1248
      %v2769 = vcombine.low %v1252, %v1256
      %v2770 = vcombine.low %v1260, %v1264
      %v2772 = vunpack.c.l.s4 1966171168
      %v2773 = vunpack.c.0.s8 %v2772
      %v2774 = vlaneseq
      %v2775 = vshrl.u32 %v2774, 7
      %v2776 = vsub.s32 %v2773, %v2775
      %v2777 = vrot.slane %v2767, %v2776
      %v2779 = vunpack.c.l.s4 1966171168
      %v2780 = vunpack.c.0.s8 %v2779
      %v2781 = vlaneseq
      %v2782 = vshrl.u32 %v2781, 7
      %v2783 = vsub.s32 %v2780, %v2782
      %v2784 = vrot.slane %v2768, %v2783
      %v2786 = vunpack.c.l.s4 1966171168
      %v2787 = vunpack.c.0.s8 %v2786
      %v2788 = vlaneseq
      %v2789 = vshrl.u32 %v2788, 7
      %v2790 = vsub.s32 %v2787, %v2789
      %v2791 = vrot.slane %v2769, %v2790
      %v2793 = vunpack.c.l.s4 1966171168
      %v2794 = vunpack.c.0.s8 %v2793
      %v2795 = vlaneseq
      %v2796 = vshrl.u32 %v2795, 7
      %v2797 = vsub.s32 %v2794, %v2796
      %v2798 = vrot.slane %v2770, %v2797
      %v2799 = vcombine.low %v2777, %v2784
      %v2800 = vcombine.low %v2791, %v2798
      %v2802 = vunpack.c.l.s4 1966171168
      %v2803 = vunpack.c.0.s8 %v2802
      %v2804 = vlaneseq
      %v2805 = vshrl.u32 %v2804, 7
      %v2806 = vsub.s32 %v2803, %v2805
      %v2807 = vrot.slane %v2799, %v2806
      %v2809 = vunpack.c.l.s4 1966171168
      %v2810 = vunpack.c.0.s8 %v2809
      %v2811 = vlaneseq
      %v2812 = vshrl.u32 %v2811, 7
      %v2813 = vsub.s32 %v2810, %v2812
      %v2814 = vrot.slane %v2800, %v2813
      %v2815 = vcombine.low %v2807, %v2814
      %v2816 = vcombine.low %v1268, %v1272
      %v2817 = vcombine.low %v1276, %v1280
      %v2818 = vcombine.low %v1284, %v1288
      %v2819 = vcombine.low %v1292, %v1296
      %v2821 = vunpack.c.l.s4 1966171168
      %v2822 = vunpack.c.0.s8 %v2821
      %v2823 = vlaneseq
      %v2824 = vshrl.u32 %v2823, 7
      %v2825 = vsub.s32 %v2822, %v2824
      %v2826 = vrot.slane %v2816, %v2825
      %v2828 = vunpack.c.l.s4 1966171168
      %v2829 = vunpack.c.0.s8 %v2828
      %v2830 = vlaneseq
      %v2831 = vshrl.u32 %v2830, 7
      %v2832 = vsub.s32 %v2829, %v2831
      %v2833 = vrot.slane %v2817, %v2832
      %v2835 = vunpack.c.l.s4 1966171168
      %v2836 = vunpack.c.0.s8 %v2835
      %v2837 = vlaneseq
      %v2838 = vshrl.u32 %v2837, 7
      %v2839 = vsub.s32 %v2836, %v2838
      %v2840 = vrot.slane %v2818, %v2839
      %v2842 = vunpack.c.l.s4 1966171168
      %v2843 = vunpack.c.0.s8 %v2842
      %v2844 = vlaneseq
      %v2845 = vshrl.u32 %v2844, 7
      %v2846 = vsub.s32 %v2843, %v2845
      %v2847 = vrot.slane %v2819, %v2846
      %v2848 = vcombine.low %v2826, %v2833
      %v2849 = vcombine.low %v2840, %v2847
      %v2851 = vunpack.c.l.s4 1966171168
      %v2852 = vunpack.c.0.s8 %v2851
      %v2853 = vlaneseq
      %v2854 = vshrl.u32 %v2853, 7
      %v2855 = vsub.s32 %v2852, %v2854
      %v2856 = vrot.slane %v2848, %v2855
      %v2858 = vunpack.c.l.s4 1966171168
      %v2859 = vunpack.c.0.s8 %v2858
      %v2860 = vlaneseq
      %v2861 = vshrl.u32 %v2860, 7
      %v2862 = vsub.s32 %v2859, %v2861
      %v2863 = vrot.slane %v2849, %v2862
      %v2864 = vcombine.low %v2856, %v2863
      %2865 = vset.pattern.permute.xlu0 0
      %2866 = vperm.xlu0 %2865, %v1345
      %v2867 = vpop.permute.xlu0 %2866
      %2868 = vset.pattern.permute.xlu0 0
      %2869 = vperm.xlu0 %2868, %v1394
      %v2870 = vpop.permute.xlu0 %2869
      %2871 = vset.pattern.permute.xlu0 0
      %2872 = vperm.xlu0 %2871, %v1443
      %v2873 = vpop.permute.xlu0 %2872
      %2874 = vset.pattern.permute.xlu0 0
      %2875 = vperm.xlu0 %2874, %v1492
      %v2876 = vpop.permute.xlu0 %2875
      %2877 = vset.pattern.permute.xlu0 0
      %2878 = vperm.xlu0 %2877, %v1541
      %v2879 = vpop.permute.xlu0 %2878
      %2880 = vset.pattern.permute.xlu0 0
      %2881 = vperm.xlu0 %2880, %v1590
      %v2882 = vpop.permute.xlu0 %2881
      %2883 = vset.pattern.permute.xlu0 0
      %2884 = vperm.xlu0 %2883, %v1639
      %v2885 = vpop.permute.xlu0 %2884
      %2886 = vset.pattern.permute.xlu0 0
      %2887 = vperm.xlu0 %2886, %v1688
      %v2888 = vpop.permute.xlu0 %2887
      %2889 = vset.pattern.permute.xlu0 0
      %2890 = vperm.xlu0 %2889, %v1737
      %v2891 = vpop.permute.xlu0 %2890
      %2892 = vset.pattern.permute.xlu0 0
      %2893 = vperm.xlu0 %2892, %v1786
      %v2894 = vpop.permute.xlu0 %2893
      %2895 = vset.pattern.permute.xlu0 0
      %2896 = vperm.xlu0 %2895, %v1835
      %v2897 = vpop.permute.xlu0 %2896
      %2898 = vset.pattern.permute.xlu0 0
      %2899 = vperm.xlu0 %2898, %v1884
      %v2900 = vpop.permute.xlu0 %2899
      %2901 = vset.pattern.permute.xlu0 0
      %2902 = vperm.xlu0 %2901, %v1933
      %v2903 = vpop.permute.xlu0 %2902
      %2904 = vset.pattern.permute.xlu0 0
      %2905 = vperm.xlu0 %2904, %v1982
      %v2906 = vpop.permute.xlu0 %2905
      %2907 = vset.pattern.permute.xlu0 0
      %2908 = vperm.xlu0 %2907, %v2031
      %v2909 = vpop.permute.xlu0 %2908
      %2910 = vset.pattern.permute.xlu0 0
      %2911 = vperm.xlu0 %2910, %v2080
      %v2912 = vpop.permute.xlu0 %2911
      %2913 = vset.pattern.permute.xlu0 0
      %2914 = vperm.xlu0 %2913, %v2129
      %v2915 = vpop.permute.xlu0 %2914
      %2916 = vset.pattern.permute.xlu0 0
      %2917 = vperm.xlu0 %2916, %v2178
      %v2918 = vpop.permute.xlu0 %2917
      %2919 = vset.pattern.permute.xlu0 0
      %2920 = vperm.xlu0 %2919, %v2227
      %v2921 = vpop.permute.xlu0 %2920
      %2922 = vset.pattern.permute.xlu0 0
      %2923 = vperm.xlu0 %2922, %v2276
      %v2924 = vpop.permute.xlu0 %2923
      %2925 = vset.pattern.permute.xlu0 0
      %2926 = vperm.xlu0 %2925, %v2325
      %v2927 = vpop.permute.xlu0 %2926
      %2928 = vset.pattern.permute.xlu0 0
      %2929 = vperm.xlu0 %2928, %v2374
      %v2930 = vpop.permute.xlu0 %2929
      %2931 = vset.pattern.permute.xlu0 0
      %2932 = vperm.xlu0 %2931, %v2423
      %v2933 = vpop.permute.xlu0 %2932
      %2934 = vset.pattern.permute.xlu0 0
      %2935 = vperm.xlu0 %2934, %v2472
      %v2936 = vpop.permute.xlu0 %2935
      %2937 = vset.pattern.permute.xlu0 0
      %2938 = vperm.xlu0 %2937, %v2521
      %v2939 = vpop.permute.xlu0 %2938
      %2940 = vset.pattern.permute.xlu0 0
      %2941 = vperm.xlu0 %2940, %v2570
      %v2942 = vpop.permute.xlu0 %2941
      %2943 = vset.pattern.permute.xlu0 0
      %2944 = vperm.xlu0 %2943, %v2619
      %v2945 = vpop.permute.xlu0 %2944
      %2946 = vset.pattern.permute.xlu0 0
      %2947 = vperm.xlu0 %2946, %v2668
      %v2948 = vpop.permute.xlu0 %2947
      %2949 = vset.pattern.permute.xlu0 0
      %2950 = vperm.xlu0 %2949, %v2717
      %v2951 = vpop.permute.xlu0 %2950
      %2952 = vset.pattern.permute.xlu0 0
      %2953 = vperm.xlu0 %2952, %v2766
      %v2954 = vpop.permute.xlu0 %2953
      %2955 = vset.pattern.permute.xlu0 0
      %2956 = vperm.xlu0 %2955, %v2815
      %v2957 = vpop.permute.xlu0 %2956
      %2958 = vset.pattern.permute.xlu0 0
      %2959 = vperm.xlu0 %2958, %v2864
      %v2960 = vpop.permute.xlu0 %2959
      %v2961 = vlaneseq
      %v2962 = vand.u32 %v2961, 127
      %v2963 = vlaneseq
      %v2964 = vshrl.u32 %v2963, 7
      %v2965 = vsub.s32 %v2962, %v2964
      %v2966 = vrot.slane %v2867, %v2965
      %v2967 = vadd.s32 %v2962, 4294967288
      %v2968 = vlaneseq
      %v2969 = vshrl.u32 %v2968, 7
      %v2970 = vsub.s32 %v2967, %v2969
      %v2971 = vrot.slane %v2870, %v2970
      %vm2972 = vcmask 130112
      %v2973 = vsel %vm2972, %v2971, %v2966
      %v2974 = vadd.s32 %v2962, 4294967280
      %v2975 = vlaneseq
      %v2976 = vshrl.u32 %v2975, 7
      %v2977 = vsub.s32 %v2974, %v2976
      %v2978 = vrot.slane %v2873, %v2977
      %vm2979 = vcmask 195712
      %v2980 = vsel %vm2979, %v2978, %v2973
      %v2981 = vadd.s32 %v2962, 4294967272
      %v2982 = vlaneseq
      %v2983 = vshrl.u32 %v2982, 7
      %v2984 = vsub.s32 %v2981, %v2983
      %v2985 = vrot.slane %v2876, %v2984
      %vm2986 = vcmask 261312
      %v2987 = vsel %vm2986, %v2985, %v2980
      %v2988 = vadd.s32 %v2962, 4294967264
      %v2989 = vlaneseq
      %v2990 = vshrl.u32 %v2989, 7
      %v2991 = vsub.s32 %v2988, %v2990
      %v2992 = vrot.slane %v2879, %v2991
      %vm2993 = vcmask 326912
      %v2994 = vsel %vm2993, %v2992, %v2987
      %v2995 = vadd.s32 %v2962, 4294967256
      %v2996 = vlaneseq
      %v2997 = vshrl.u32 %v2996, 7
      %v2998 = vsub.s32 %v2995, %v2997
      %v2999 = vrot.slane %v2882, %v2998
      %vm3000 = vcmask 392512
      %v3001 = vsel %vm3000, %v2999, %v2994
      %v3002 = vadd.s32 %v2962, 4294967248
      %v3003 = vlaneseq
      %v3004 = vshrl.u32 %v3003, 7
      %v3005 = vsub.s32 %v3002, %v3004
      %v3006 = vrot.slane %v2885, %v3005
      %vm3007 = vcmask 458112
      %v3008 = vsel %vm3007, %v3006, %v3001
      %v3009 = vadd.s32 %v2962, 4294967240
      %v3010 = vlaneseq
      %v3011 = vshrl.u32 %v3010, 7
      %v3012 = vsub.s32 %v3009, %v3011
      %v3013 = vrot.slane %v2888, %v3012
      %vm3014 = vcmask 523712
      %v3015 = vsel %vm3014, %v3013, %v3008
      %v3016 = vadd.s32 %v2962, 4294967232
      %v3017 = vlaneseq
      %v3018 = vshrl.u32 %v3017, 7
      %v3019 = vsub.s32 %v3016, %v3018
      %v3020 = vrot.slane %v2891, %v3019
      %vm3021 = vcmask 589312
      %v3022 = vsel %vm3021, %v3020, %v3015
      %v3023 = vadd.s32 %v2962, 4294967224
      %v3024 = vlaneseq
      %v3025 = vshrl.u32 %v3024, 7
      %v3026 = vsub.s32 %v3023, %v3025
      %v3027 = vrot.slane %v2894, %v3026
      %vm3028 = vcmask 654912
      %v3029 = vsel %vm3028, %v3027, %v3022
      %v3030 = vadd.s32 %v2962, 4294967216
      %v3031 = vlaneseq
      %v3032 = vshrl.u32 %v3031, 7
      %v3033 = vsub.s32 %v3030, %v3032
      %v3034 = vrot.slane %v2897, %v3033
      %vm3035 = vcmask 720512
      %v3036 = vsel %vm3035, %v3034, %v3029
      %v3037 = vadd.s32 %v2962, 4294967208
      %v3038 = vlaneseq
      %v3039 = vshrl.u32 %v3038, 7
      %v3040 = vsub.s32 %v3037, %v3039
      %v3041 = vrot.slane %v2900, %v3040
      %vm3042 = vcmask 786112
      %v3043 = vsel %vm3042, %v3041, %v3036
      %v3044 = vadd.s32 %v2962, 4294967200
      %v3045 = vlaneseq
      %v3046 = vshrl.u32 %v3045, 7
      %v3047 = vsub.s32 %v3044, %v3046
      %v3048 = vrot.slane %v2903, %v3047
      %vm3049 = vcmask 851712
      %v3050 = vsel %vm3049, %v3048, %v3043
      %v3051 = vadd.s32 %v2962, 4294967192
      %v3052 = vlaneseq
      %v3053 = vshrl.u32 %v3052, 7
      %v3054 = vsub.s32 %v3051, %v3053
      %v3055 = vrot.slane %v2906, %v3054
      %vm3056 = vcmask 917312
      %v3057 = vsel %vm3056, %v3055, %v3050
      %v3058 = vadd.s32 %v2962, 4294967184
      %v3059 = vlaneseq
      %v3060 = vshrl.u32 %v3059, 7
      %v3061 = vsub.s32 %v3058, %v3060
      %v3062 = vrot.slane %v2909, %v3061
      %vm3063 = vcmask 982912
      %v3064 = vsel %vm3063, %v3062, %v3057
      %v3065 = vadd.s32 %v2962, 4294967176
      %v3066 = vlaneseq
      %v3067 = vshrl.u32 %v3066, 7
      %v3068 = vsub.s32 %v3065, %v3067
      %v3069 = vrot.slane %v2912, %v3068
      %vm3070 = vcmask 1048512
      %v3071 = vsel %vm3070, %v3069, %v3064
      %v3072 = vlaneseq
      %v3073 = vshrl.u32 %v3072, 7
      %v3074 = vsub.s32 %v2962, %v3073
      %v3075 = vrot.slane %v2915, %v3074
      %v3076 = vlaneseq
      %v3077 = vshrl.u32 %v3076, 7
      %v3078 = vsub.s32 %v2967, %v3077
      %v3079 = vrot.slane %v2918, %v3078
      %v3080 = vsel %vm2972, %v3079, %v3075
      %v3081 = vlaneseq
      %v3082 = vshrl.u32 %v3081, 7
      %v3083 = vsub.s32 %v2974, %v3082
      %v3084 = vrot.slane %v2921, %v3083
      %v3085 = vsel %vm2979, %v3084, %v3080
      %v3086 = vlaneseq
      %v3087 = vshrl.u32 %v3086, 7
      %v3088 = vsub.s32 %v2981, %v3087
      %v3089 = vrot.slane %v2924, %v3088
      %v3090 = vsel %vm2986, %v3089, %v3085
      %v3091 = vlaneseq
      %v3092 = vshrl.u32 %v3091, 7
      %v3093 = vsub.s32 %v2988, %v3092
      %v3094 = vrot.slane %v2927, %v3093
      %v3095 = vsel %vm2993, %v3094, %v3090
      %v3096 = vlaneseq
      %v3097 = vshrl.u32 %v3096, 7
      %v3098 = vsub.s32 %v2995, %v3097
      %v3099 = vrot.slane %v2930, %v3098
      %v3100 = vsel %vm3000, %v3099, %v3095
      %v3101 = vlaneseq
      %v3102 = vshrl.u32 %v3101, 7
      %v3103 = vsub.s32 %v3002, %v3102
      %v3104 = vrot.slane %v2933, %v3103
      %v3105 = vsel %vm3007, %v3104, %v3100
      %v3106 = vlaneseq
      %v3107 = vshrl.u32 %v3106, 7
      %v3108 = vsub.s32 %v3009, %v3107
      %v3109 = vrot.slane %v2936, %v3108
      %v3110 = vsel %vm3014, %v3109, %v3105
      %v3111 = vlaneseq
      %v3112 = vshrl.u32 %v3111, 7
      %v3113 = vsub.s32 %v3016, %v3112
      %v3114 = vrot.slane %v2939, %v3113
      %v3115 = vsel %vm3021, %v3114, %v3110
      %v3116 = vlaneseq
      %v3117 = vshrl.u32 %v3116, 7
      %v3118 = vsub.s32 %v3023, %v3117
      %v3119 = vrot.slane %v2942, %v3118
      %v3120 = vsel %vm3028, %v3119, %v3115
      %v3121 = vlaneseq
      %v3122 = vshrl.u32 %v3121, 7
      %v3123 = vsub.s32 %v3030, %v3122
      %v3124 = vrot.slane %v2945, %v3123
      %v3125 = vsel %vm3035, %v3124, %v3120
      %v3126 = vlaneseq
      %v3127 = vshrl.u32 %v3126, 7
      %v3128 = vsub.s32 %v3037, %v3127
      %v3129 = vrot.slane %v2948, %v3128
      %v3130 = vsel %vm3042, %v3129, %v3125
      %v3131 = vlaneseq
      %v3132 = vshrl.u32 %v3131, 7
      %v3133 = vsub.s32 %v3044, %v3132
      %v3134 = vrot.slane %v2951, %v3133
      %v3135 = vsel %vm3049, %v3134, %v3130
      %v3136 = vlaneseq
      %v3137 = vshrl.u32 %v3136, 7
      %v3138 = vsub.s32 %v3051, %v3137
      %v3139 = vrot.slane %v2954, %v3138
      %v3140 = vsel %vm3056, %v3139, %v3135
      %v3141 = vlaneseq
      %v3142 = vshrl.u32 %v3141, 7
      %v3143 = vsub.s32 %v3058, %v3142
      %v3144 = vrot.slane %v2957, %v3143
      %v3145 = vsel %vm3063, %v3144, %v3140
      %v3146 = vlaneseq
      %v3147 = vshrl.u32 %v3146, 7
      %v3148 = vsub.s32 %v3065, %v3147
      %v3149 = vrot.slane %v2960, %v3148
      %v3150 = vsel %vm3070, %v3149, %v3145
      %v3151 = vcombine.low %v3071, %v3150
      %v3153 = vunpack.c.l.s4 1966171168
      %v3154 = vunpack.c.0.s8 %v3153
      %v3155 = vlaneseq
      %v3156 = vshrl.u32 %v3155, 7
      %v3157 = vsub.s32 %v3154, %v3156
      %v3158 = vrot.slane %v3151, %v3157
      %v3160 = vunpack.c.l.s4 1966171168
      %v3161 = vunpack.c.0.s8 %v3160
      %v3162 = vlaneseq
      %v3163 = vshrl.u32 %v3162, 7
      %v3164 = vsub.s32 %v3161, %v3163
      %v3165 = vrot.slane %v3158, %v3164
      %v3167 = vlaneseq
      %vm3168 = vcmp.ge.s32.totalorder %v3167, 0
      %vm3169 = vcmp.lt.s32.totalorder %v3167, 256
      %vm3170 = vmand %vm3168, %vm3169
      %3171 = vst.msk [vmem:[#allocation2] sm:$0x3] %vm3170, %v3165
    $region13: #{tpu_custom_call.1} parent=1 // pred_fallthru
      _
    %v3172 = vld [vmem:[%s0] sm:$0xff]
    %v3173 = vld [vmem:[%s1] sm:$0xff]
    %v3174 = vld [vmem:[%s1 + $0x8] sm:$0xff]
    %v3175 = vld [vmem:[%s1 + $0x10] sm:$0xff]
    %v3176 = vld [vmem:[%s1 + $0x18] sm:$0xff]
    %v3177 = vld [vmem:[%s1 + $0x20] sm:$0xff]
    %v3178 = vld [vmem:[%s1 + $0x28] sm:$0xff]
    %v3179 = vld [vmem:[%s1 + $0x30] sm:$0xff]
    %v3180 = vld [vmem:[%s1 + $0x38] sm:$0xff]
    %v3181 = vld [vmem:[%s1 + $0x40] sm:$0xff]
    %v3182 = vld [vmem:[%s1 + $0x48] sm:$0xff]
    %v3183 = vld [vmem:[%s1 + $0x50] sm:$0xff]
    %v3184 = vld [vmem:[%s1 + $0x58] sm:$0xff]
    %v3185 = vld [vmem:[%s1 + $0x60] sm:$0xff]
    %v3186 = vld [vmem:[%s1 + $0x68] sm:$0xff]
    %v3187 = vld [vmem:[%s1 + $0x70] sm:$0xff]
    %v3188 = vld [vmem:[%s1 + $0x78] sm:$0xff]
    %v3189 = vld [vmem:[%s1 + $0x80] sm:$0xff]
    %v3190 = vld [vmem:[%s1 + $0x88] sm:$0xff]
    %v3191 = vld [vmem:[%s1 + $0x90] sm:$0xff]
    %v3192 = vld [vmem:[%s1 + $0x98] sm:$0xff]
    %v3193 = vld [vmem:[%s1 + $0xa0] sm:$0xff]
    %v3194 = vld [vmem:[%s1 + $0xa8] sm:$0xff]
    %v3195 = vld [vmem:[%s1 + $0xb0] sm:$0xff]
    %v3196 = vld [vmem:[%s1 + $0xb8] sm:$0xff]
    %v3197 = vld [vmem:[%s1 + $0xc0] sm:$0xff]
    %v3198 = vld [vmem:[%s1 + $0xc8] sm:$0xff]
    %v3199 = vld [vmem:[%s1 + $0xd0] sm:$0xff]
    %v3200 = vld [vmem:[%s1 + $0xd8] sm:$0xff]
    %v3201 = vld [vmem:[%s1 + $0xe0] sm:$0xff]
    %v3202 = vld [vmem:[%s1 + $0xe8] sm:$0xff]
    %v3203 = vld [vmem:[%s1 + $0xf0] sm:$0xff]
    %v3204 = vld [vmem:[%s1 + $0xf8] sm:$0xff]
    %vm3205 = vcmask 523264
    %v3207 = vsel %vm3205, %v3172, 0
    %v3210 = vsel %vm3205, %v3173, 0
    %v3213 = vsel %vm3205, %v3174, 0
    %v3216 = vsel %vm3205, %v3175, 0
    %v3219 = vsel %vm3205, %v3176, 0
    %v3222 = vsel %vm3205, %v3177, 0
    %v3225 = vsel %vm3205, %v3178, 0
    %v3228 = vsel %vm3205, %v3179, 0
    %v3231 = vsel %vm3205, %v3180, 0
    %v3234 = vsel %vm3205, %v3181, 0
    %v3237 = vsel %vm3205, %v3182, 0
    %v3240 = vsel %vm3205, %v3183, 0
    %v3243 = vsel %vm3205, %v3184, 0
    %v3246 = vsel %vm3205, %v3185, 0
    %v3249 = vsel %vm3205, %v3186, 0
    %v3252 = vsel %vm3205, %v3187, 0
    %v3255 = vsel %vm3205, %v3188, 0
    %v3258 = vsel %vm3205, %v3189, 0
    %v3261 = vsel %vm3205, %v3190, 0
    %v3264 = vsel %vm3205, %v3191, 0
    %v3267 = vsel %vm3205, %v3192, 0
    %v3270 = vsel %vm3205, %v3193, 0
    %v3273 = vsel %vm3205, %v3194, 0
    %v3276 = vsel %vm3205, %v3195, 0
    %v3279 = vsel %vm3205, %v3196, 0
    %v3282 = vsel %vm3205, %v3197, 0
    %v3285 = vsel %vm3205, %v3198, 0
    %v3288 = vsel %vm3205, %v3199, 0
    %v3291 = vsel %vm3205, %v3200, 0
    %v3294 = vsel %vm3205, %v3201, 0
    %v3297 = vsel %vm3205, %v3202, 0
    %v3300 = vsel %vm3205, %v3203, 0
    %v3303 = vsel %vm3205, %v3204, 0
    %3305 = vmatprep.subr.mxu0 0.0
    %3306 = vmatpush1.xpose.msra.mxu0 %v3255
    %3307 = vmatprep.subr.mxu0 0.0
    %3308 = vmatpush1.xpose.msra.mxu0 %v3252
    %3309 = vmatprep.subr.mxu0 0.0
    %3310 = vmatpush1.xpose.msra.mxu0 %v3249
    %3311 = vmatprep.subr.mxu0 0.0
    %3312 = vmatpush1.xpose.msra.mxu0 %v3246
    %3313 = vmatprep.subr.mxu0 0.0
    %3314 = vmatpush1.xpose.msra.mxu0 %v3243
    %3315 = vmatprep.subr.mxu0 0.0
    %3316 = vmatpush1.xpose.msra.mxu0 %v3240
    %3317 = vmatprep.subr.mxu0 0.0
    %3318 = vmatpush1.xpose.msra.mxu0 %v3237
    %3319 = vmatprep.subr.mxu0 0.0
    %3320 = vmatpush1.xpose.msra.mxu0 %v3234
    %3321 = vmatprep.subr.mxu0 0.0
    %3322 = vmatpush1.xpose.msra.mxu0 %v3231
    %3323 = vmatprep.subr.mxu0 0.0
    %3324 = vmatpush1.xpose.msra.mxu0 %v3228
    %3325 = vmatprep.subr.mxu0 0.0
    %3326 = vmatpush1.xpose.msra.mxu0 %v3225
    %3327 = vmatprep.subr.mxu0 0.0
    %3328 = vmatpush1.xpose.msra.mxu0 %v3222
    %3329 = vmatprep.subr.mxu0 0.0
    %3330 = vmatpush1.xpose.msra.mxu0 %v3219
    %3331 = vmatprep.subr.mxu0 0.0
    %3332 = vmatpush1.xpose.msra.mxu0 %v3216
    %3333 = vmatprep.subr.mxu0 0.0
    %3334 = vmatpush1.xpose.msra.mxu0 %v3213
    %3335 = vmatprep.subr.mxu0 0.0
    %3336 = vmatpush1.xpose.msra.mxu0 %v3210
    %3337 = vmatprep.subr.mxu0 0.0
    %3338 = vmatpush2.xpose.msra.mxu0 %v3303
    %3339 = vmatprep.subr.mxu0 0.0
    %3340 = vmatpush2.xpose.msra.mxu0 %v3300
    %3341 = vmatprep.subr.mxu0 0.0
    %3342 = vmatpush2.xpose.msra.mxu0 %v3297
    %3343 = vmatprep.subr.mxu0 0.0
    %3344 = vmatpush2.xpose.msra.mxu0 %v3294
    %3345 = vmatprep.subr.mxu0 0.0
    %3346 = vmatpush2.xpose.msra.mxu0 %v3291
    %3347 = vmatprep.subr.mxu0 0.0
    %3348 = vmatpush2.xpose.msra.mxu0 %v3288
    %3349 = vmatprep.subr.mxu0 0.0
    %3350 = vmatpush2.xpose.msra.mxu0 %v3285
    %3351 = vmatprep.subr.mxu0 0.0
    %3352 = vmatpush2.xpose.msra.mxu0 %v3282
    %3353 = vmatprep.subr.mxu0 0.0
    %3354 = vmatpush2.xpose.msra.mxu0 %v3279
    %3355 = vmatprep.subr.mxu0 0.0
    %3356 = vmatpush2.xpose.msra.mxu0 %v3276
    %3357 = vmatprep.subr.mxu0 0.0
    %3358 = vmatpush2.xpose.msra.mxu0 %v3273
    %3359 = vmatprep.subr.mxu0 0.0
    %3360 = vmatpush2.xpose.msra.mxu0 %v3270
    %3361 = vmatprep.subr.mxu0 0.0
    %3362 = vmatpush2.xpose.msra.mxu0 %v3267
    %3363 = vmatprep.subr.mxu0 0.0
    %3364 = vmatpush2.xpose.msra.mxu0 %v3264
    %3365 = vmatprep.subr.mxu0 0.0
    %3366 = vmatpush2.xpose.msra.mxu0 %v3261
    %3367 = vmatprep.subr.mxu0 0.0
    %3368 = vmatpush2.xpose.msra.mxu0 %v3258
    %3369 = vmatprep.mubr.f32.mxu0 0.0
    %3370 = vmatmul.mubr.f32.gmra.mxu0 %v3207
    %v3371 = vpop.f32.mrf.mxu0
    %v3372 = vadd.f32 0.0, %v3371
    %v3373 = vpop.f32.mrf.mxu0
    %v3374 = vadd.f32 0.0, %v3373
    %3375 = vdwg.mxu0
    %v3376 = vld [vmem:[#allocation2] sm:$0x3]
    %v3378 = vlaneseq
    %v3379 = vshrl.u32 %v3378, 7
    %v3380 = vsub.s32 0, %v3379
    %v3381 = vrot.slane %v3376, %v3380
    %v3382 = vlaneseq
    %v3383 = vshrl.u32 %v3382, 7
    %v3384 = vsub.s32 1, %v3383
    %v3385 = vrot.slane %v3376, %v3384
    %v3388 = vmul.f32 %v3372, %v3381
    %v3389 = vmul.f32 %v3374, %v3385
    %3390 = vst [vmem:[#allocation3] sm:$0xff] %v3388
    %3391 = vst [vmem:[#allocation3 + $0x8] sm:$0xff] %v3389
    // Predicated region
    $region14: #{tpu_custom_call.1} parent=1 // pred_check
      _
    $region15: #{tpu_custom_call.1} parent=1 // pred_check_branch
      %3393 = sbr.rel (0) target = $region17
    $region16: #{tpu_custom_call.1} parent=1 // pred_region
      %s3395 = ssub.s32 256, 256
      %3396 = vsyncadd [#allocation4], %s3395
      %s3398 = sshll.u32 [#allocation3], 4
      %s3399 = int_to_ptr.vmem [resolvable:$true] %s3398
      %3401 = dma.vmem_to_hbm [thread:$0]  %s3399, 256, %s2, [#allocation4]
    $region17: #{tpu_custom_call.1} parent=1 // pred_fallthru
      _
    // Predicated region
    $region18: #{tpu_custom_call.1} parent=1 // pred_check
      _
    $region19: #{tpu_custom_call.1} parent=1 // pred_check_branch
      %3403 = sbr.rel (0) target = $region21
    $region20: #{tpu_custom_call.1} parent=1 // pred_region
      %3404 = dma.done [#allocation4], 256
    $region21: #{tpu_custom_call.1} parent=1 // pred_fallthru
      _
    %3405 = vsyncpa [#allocation4], 1

</llo_original>
